<compile_context>
chip_gen: v5e
topology: v5e:2x2
jax: 0.10.0
libtpu: 0.0.40
codegen_flags: <defaults>
</compile_context>

<pallas_src>
import functools
import math

import numpy as np
import jax
import jax.numpy as jnp
from jax.experimental import pallas as pl
from jax.experimental.pallas import tpu as pltpu


def _round_up(n, m):
    return ((n + m - 1) // m) * m


# ----------------------------------------------------------------------------
# Pure-JAX reference (faithful to the PyTorch module; used only for checking)
# ----------------------------------------------------------------------------
def _sigmoid(x):
    return 1.0 / (1.0 + jnp.exp(-x))


def _lstm(seq, wih_t, whh_t, b, hidden):
    """Single-layer, batch=1 LSTM. seq: (T, F); returns ((T, H), last h (1, H))."""
    T = seq.shape[0]
    gx = jnp.dot(seq, wih_t, preferred_element_type=jnp.float32) + b  # (T, 4H)
    h = jnp.zeros((1, hidden), jnp.float32)
    c = jnp.zeros((1, hidden), jnp.float32)
    outs = []
    for t in range(T):
        g = gx[t:t + 1, :] + jnp.dot(h, whh_t, preferred_element_type=jnp.float32)
        i = _sigmoid(g[:, 0 * hidden:1 * hidden])
        f = _sigmoid(g[:, 1 * hidden:2 * hidden])
        gg = jnp.tanh(g[:, 2 * hidden:3 * hidden])
        o = _sigmoid(g[:, 3 * hidden:4 * hidden])
        c = f * c + i * gg
        h = o * jnp.tanh(c)
        outs.append(h)
    return jnp.concatenate(outs, axis=0), h


def _cocoa_math(E, x, y,
                wih_x1, whh_x1, b_x1, wih_x2, whh_x2, b_x2,
                wih_y1, whh_y1, b_y1, wih_y2, whh_y2, b_y2,
                wxl, bxl, wyl, byl, wc, bc):
    H = 2 * E
    seq_x, _ = _lstm(x, wih_x1, whh_x1, b_x1, H)
    _, hx = _lstm(seq_x, wih_x2, whh_x2, b_x2, E)
    xe = jnp.dot(hx, wxl, preferred_element_type=jnp.float32) + bxl
    seq_y, _ = _lstm(y, wih_y1, whh_y1, b_y1, H)
    _, hy = _lstm(seq_y, wih_y2, whh_y2, b_y2, E)
    ye = jnp.dot(hy, wyl, preferred_element_type=jnp.float32) + byl
    xy = jnp.concatenate([xe, ye], axis=-1)
    xy = jnp.dot(xy, wc, preferred_element_type=jnp.float32) + bc
    return xy[:, :E], xy[:, E:]


def cocoa_reference(x, y, params, embedding_dim):
    xo, yo = _cocoa_math(embedding_dim, x, y, *params)
    return xo[0], yo[0]


# ----------------------------------------------------------------------------
# Offline parameter packing into a single VMEM slab (numpy, float64 folds)
# ----------------------------------------------------------------------------
def pack_params(params, seq_len, x_nf, y_nf, E):
    (wih_x1, whh_x1, b_x1, wih_x2, whh_x2, b_x2,
     wih_y1, whh_y1, b_y1, wih_y2, whh_y2, b_y2,
     wxl, bxl, wyl, byl, wc, bc) = [np.asarray(p, np.float64) for p in params]

    H1, H2 = 2 * E, E            # per-encoder hidden sizes (layer 1 / layer 2)
    F1, F2 = 2 * H1, 2 * H2      # fused (x+y) hidden widths
    G1, G2 = 4 * F1, 4 * F2      # fused gate-row widths
    LANES = _round_up(G1 + G2, 128)
    OUT_L = _round_up(2 * E, 128)

    # 8-aligned row offsets inside the slab.
    R_WINX = 0
    R_WINY = _round_up(x_nf, 8)
    R_WH1 = R_WINY + _round_up(y_nf, 8)
    R_WH2 = R_WH1 + F1
    R_WHD = R_WH2 + F2
    R_CONST = _round_up(R_WHD + F2, 8)
    #   R_CONST + 0 : [ b_in (G1 lanes) | b_2 (G2 lanes) ]
    #   R_CONST + 1 : [ b_head (2E lanes) ]
    #   R_CONST + 2 : [ s1 (post-tanh scale) | s2 ]
    #   R_CONST + 3 : [ off1                 | off2 ]
    ROWS = _round_up(R_CONST + 4, 8)

    slab = np.zeros((ROWS, LANES), np.float64)

    def prescale(w, h):
        # Fold sigmoid(x) = 0.5*tanh(0.5*x) + 0.5 pre-scale into the weights:
        # scale i/f/o gate columns by 0.5, leave the g gate untouched (exact).
        w = np.array(w, np.float64)
        w[..., 0 * h:1 * h] *= 0.5
        w[..., 1 * h:2 * h] *= 0.5
        w[..., 3 * h:4 * h] *= 0.5
        return w

    def place_gates(w, row0, col0, h, group, slot):
        # w: (rows, 4*h) in PyTorch gate order [i|f|g|o]; scatter each gate block
        # into the fused interleaved layout [i_x,i_y,f_x,f_y,g_x,g_y,o_x,o_y].
        for k in range(4):
            c = col0 + k * group + slot * h
            slab[row0:row0 + w.shape[0], c:c + h] = w[:, k * h:(k + 1) * h]

    # layer-1 input projection (x rows / y rows in separate 8-aligned blocks)
    place_gates(prescale(wih_x1, H1), R_WINX, 0, H1, F1, 0)
    place_gates(prescale(wih_y1, H1), R_WINY, 0, H1, F1, 1)
    place_gates(prescale(b_x1, H1), R_CONST, 0, H1, F1, 0)
    place_gates(prescale(b_y1, H1), R_CONST, 0, H1, F1, 1)

    # fused recurrence weight: h1 -> [layer-1 hh gates | layer-2 input proj]
    place_gates(prescale(whh_x1, H1), R_WH1, 0, H1, F1, 0)
    place_gates(prescale(whh_y1, H1), R_WH1 + H1, 0, H1, F1, 1)
    place_gates(prescale(wih_x2, H2), R_WH1, G1, H2, F2, 0)
    place_gates(prescale(wih_y2, H2), R_WH1 + H1, G1, H2, F2, 1)

    # layer-2 hidden recurrence + fused layer-2 bias (same const row as b_in)
    place_gates(prescale(whh_x2, H2), R_WH2, 0, H2, F2, 0)
    place_gates(prescale(whh_y2, H2), R_WH2 + H2, 0, H2, F2, 1)
    place_gates(prescale(b_x2, H2), R_CONST, G1, H2, F2, 0)
    place_gates(prescale(b_y2, H2), R_CONST, G1, H2, F2, 1)

    # head: (x_linear ⊕ y_linear) composed with concat_linear, folded in f64.
    wd = np.zeros((F2, 2 * E), np.float64)
    wd[0:H2, 0:E] = wxl
    wd[H2:F2, E:2 * E] = wyl
    bd = np.concatenate([bxl, byl], axis=-1)                  # (1, 2E)
    w_head = wd @ wc                                          # (2E, 2E)
    b_head = bd @ wc + bc                                     # (1, 2E)
    slab[R_WHD:R_WHD + F2, 0:2 * E] = w_head
    slab[R_CONST + 1:R_CONST + 2, 0:2 * E] = b_head

    # Baked post-tanh scale/offset rows: a = tanh(g)*s + off
    #   sigmoid gates (i,f,o): s=0.5, off=0.5 ; tanh gate (g): s=1, off=0.
    def soff(width, group):
        lane = np.arange(width)
        is_g = (lane >= 2 * group) & (lane < 3 * group)
        s = np.where(is_g, 1.0, 0.5)
        return s, 1.0 - s

    s1, off1 = soff(G1, F1)
    s2, off2 = soff(G2, F2)
    slab[R_CONST + 2, 0:G1] = s1
    slab[R_CONST + 2, G1:G1 + G2] = s2
    slab[R_CONST + 3, 0:G1] = off1
    slab[R_CONST + 3, G1:G1 + G2] = off2

    meta = dict(T=seq_len, E=E, x_nf=x_nf, y_nf=y_nf, OUT_L=OUT_L,
                R_WINX=R_WINX, R_WINY=R_WINY, R_WH1=R_WH1, R_WH2=R_WH2,
                R_WHD=R_WHD, R_CONST=R_CONST)
    return jnp.asarray(slab, jnp.float32), meta


# ----------------------------------------------------------------------------
# Pallas kernel
# ----------------------------------------------------------------------------
def _cocoa_kernel(meta, x_ref, y_ref, slab_ref, out_ref):
    T, E = meta["T"], meta["E"]
    H1, H2 = 2 * E, E
    F1, F2 = 2 * H1, 2 * H2
    G1, G2 = 4 * F1, 4 * F2
    x_nf, y_nf = meta["x_nf"], meta["y_nf"]
    RC = meta["R_CONST"]

    # Static, lane/sublane-aligned slices out of the single weight slab.
    w_in_x = slab_ref[meta["R_WINX"]:meta["R_WINX"] + x_nf, 0:G1]        # (4, 256)
    w_in_y = slab_ref[meta["R_WINY"]:meta["R_WINY"] + y_nf, 0:G1]        # (6, 256)
    w_h1 = slab_ref[meta["R_WH1"]:meta["R_WH1"] + F1, 0:G1 + G2]         # (64, 384)
    w_h2 = slab_ref[meta["R_WH2"]:meta["R_WH2"] + F2, 0:G2]              # (32, 128)
    w_hd = slab_ref[meta["R_WHD"]:meta["R_WHD"] + F2, 0:meta["OUT_L"]]   # (32, 128)
    b_in = slab_ref[RC + 0:RC + 1, 0:G1]                                 # (1, 256)
    b_2 = slab_ref[RC + 0:RC + 1, G1:G1 + G2]                            # (1, 128)
    b_hd = slab_ref[RC + 1:RC + 2, 0:meta["OUT_L"]]                      # (1, 128)
    s1 = slab_ref[RC + 2:RC + 3, 0:G1]
    s2 = slab_ref[RC + 2:RC + 3, G1:G1 + G2]
    off1 = slab_ref[RC + 3:RC + 4, 0:G1]
    off2 = slab_ref[RC + 3:RC + 4, G1:G1 + G2]

    # Layer-1 input projection for every timestep: two small batched MXU
    # matmuls (x / y feature blocks), off the recurrent critical chain.
    gx1 = (jnp.dot(x_ref[...], w_in_x, preferred_element_type=jnp.float32)
           + jnp.dot(y_ref[...], w_in_y, preferred_element_type=jnp.float32)
           + b_in)

    h1 = jnp.zeros((1, F1), jnp.float32)
    c1 = jnp.zeros((1, F1), jnp.float32)
    h2 = jnp.zeros((1, F2), jnp.float32)
    c2 = jnp.zeros((1, F2), jnp.float32)

    # Fused, software-pipelined recurrence: iteration s runs layer-1 step s and
    # layer-2 step s-1.  m1 folds the layer-1 hidden recurrence and the layer-2
    # input projection into a single matmul; m2 is independent of m1, and the
    # two gate blocks are independent of each other (full ILP per iteration).
    # The 0.5 sigmoid pre-scale is already folded into the packed weights, so
    # the activation is a single tanh + one multiply-add with baked constants.
    for s in range(T + 1):
        m1 = jnp.dot(h1, w_h1, preferred_element_type=jnp.float32) if s > 0 else None
        m2 = jnp.dot(h2, w_h2, preferred_element_type=jnp.float32) if s > 1 else None

        if s < T:                                          # layer-1 step s
            g1 = gx1[s:s + 1, :] if s == 0 else gx1[s:s + 1, :] + m1[:, 0:G1]
            a1 = jnp.tanh(g1) * s1 + off1
            c1 = a1[:, F1:2 * F1] * c1 + a1[:, 0:F1] * a1[:, 2 * F1:3 * F1]
            h1 = a1[:, 3 * F1:4 * F1] * jnp.tanh(c1)
        if s > 0:                                          # layer-2 step s-1
            gx2 = m1[:, G1:G1 + G2]
            g2 = gx2 + b_2 if s == 1 else gx2 + m2 + b_2
            a2 = jnp.tanh(g2) * s2 + off2
            c2 = a2[:, F2:2 * F2] * c2 + a2[:, 0:F2] * a2[:, 2 * F2:3 * F2]
            h2 = a2[:, 3 * F2:4 * F2] * jnp.tanh(c2)

    # Folded (x_linear ⊕ y_linear) @ concat_linear head; lane-padded to 128.
    out_ref[...] = jnp.dot(h2, w_hd, preferred_element_type=jnp.float32) + b_hd


def cocoa_forward(x, y, slab, meta):
    E = meta["E"]
    fn = pl.pallas_call(
        functools.partial(_cocoa_kernel, meta),
        out_shape=jax.ShapeDtypeStruct((1, meta["OUT_L"]), jnp.float32),
        in_specs=[pl.BlockSpec(memory_space=pltpu.MemorySpace.VMEM)] * 3,
        out_specs=pl.BlockSpec(memory_space=pltpu.MemorySpace.VMEM),
    )
    out = fn(x, y, slab)
    xy = out[0, :2 * E]       # torch.squeeze(xy, 0) -> 1-D of length 2E
    return xy[:E], xy[E:]


# ----------------------------------------------------------------------------
# Deterministic parameter construction (PyTorch-style shapes, pre-transposed)
# ----------------------------------------------------------------------------
def init_params(key, x_nf, y_nf, E):
    H = 2 * E
    keys = iter(jax.random.split(key, 32))

    def u(shape, fan):
        s = 1.0 / math.sqrt(fan)
        return jax.random.uniform(next(keys), shape, jnp.float32, -s, s)

    def lstm_params(in_f, hid):
        # PyTorch: weight_ih (4H, in), weight_hh (4H, H), bias_ih + bias_hh (4H,)
        wih = u((4 * hid, in_f), hid)
        whh = u((4 * hid, hid), hid)
        b = u((4 * hid,), hid) + u((4 * hid,), hid)
        return wih.T, whh.T, b.reshape(1, 4 * hid)

    def linear_params(in_f, out_f):
        w = u((out_f, in_f), in_f)
        b = u((out_f,), in_f)
        return w.T, b.reshape(1, out_f)

    wih_x1, whh_x1, b_x1 = lstm_params(x_nf, H)
    wih_x2, whh_x2, b_x2 = lstm_params(H, E)
    wih_y1, whh_y1, b_y1 = lstm_params(y_nf, H)
    wih_y2, whh_y2, b_y2 = lstm_params(H, E)
    wxl, bxl = linear_params(E, E)
    wyl, byl = linear_params(E, E)
    wc, bc = linear_params(2 * E, 2 * E)

    return (wih_x1, whh_x1, b_x1, wih_x2, whh_x2, b_x2,
            wih_y1, whh_y1, b_y1, wih_y2, whh_y2, b_y2,
            wxl, bxl, wyl, byl, wc, bc)


# ----------------------------------------------------------------------------
if __name__ == "__main__":
    seq_len, x_nf, y_nf, E = 8, 4, 6, 16   # embedding_dim=16 -> hidden_dim=32

    key = jax.random.PRNGKey(0)
    kx, ky, kp = jax.random.split(key, 3)
    x = jax.random.normal(kx, (seq_len, x_nf), jnp.float32)
    y = jax.random.normal(ky, (seq_len, y_nf), jnp.float32)
    params = init_params(kp, x_nf, y_nf, E)

    # One-time offline packing of all weights/biases into a single VMEM slab
    # (includes the 0.5 sigmoid pre-scale fold and the f64 head fold).
    slab, meta = pack_params(params, seq_len, x_nf, y_nf, E)

    xo, yo = cocoa_forward(x, y, slab, meta)
    jax.block_until_ready((xo, yo))

    # Correctness check against a pure-JAX reference of the original math.
    rx, ry = cocoa_reference(x, y, params, E)
    assert xo.shape == (E,) and yo.shape == (E,)
    assert jnp.allclose(xo, rx, atol=1e-4, rtol=1e-4)
    assert jnp.allclose(yo, ry, atol=1e-4, rtol=1e-4)

    print("KERNEL_OK")
</pallas_src>

<mosaic_0001>
module attributes {stable_mosaic.version = 11 : i64} {
  func.func @_cocoa_kernel(%arg0: memref<8x4xf32, #tpu.memory_space<vmem>>, %arg1: memref<8x6xf32, #tpu.memory_space<vmem>>, %arg2: memref<152x384xf32, #tpu.memory_space<vmem>>, %arg3: memref<1x128xf32, #tpu.memory_space<vmem>>) attributes {dimension_semantics = [], scalar_prefetch = 0 : i64, scratch_operands = 0 : i64, tpu.core_type = #tpu.core_type<tc>} {
    %c0 = arith.constant 0 : index
    %c0_0 = arith.constant 0 : index
    %0 = vector.load %arg2[%c0, %c0_0] : memref<152x384xf32, #tpu.memory_space<vmem>>, vector<4x256xf32>
    %c8 = arith.constant 8 : index
    %c0_1 = arith.constant 0 : index
    %1 = vector.load %arg2[%c8, %c0_1] : memref<152x384xf32, #tpu.memory_space<vmem>>, vector<6x256xf32>
    %c16 = arith.constant 16 : index
    %c0_2 = arith.constant 0 : index
    %2 = vector.load %arg2[%c16, %c0_2] : memref<152x384xf32, #tpu.memory_space<vmem>>, vector<64x384xf32>
    %c80 = arith.constant 80 : index
    %c0_3 = arith.constant 0 : index
    %3 = vector.load %arg2[%c80, %c0_3] : memref<152x384xf32, #tpu.memory_space<vmem>>, vector<32x128xf32>
    %c112 = arith.constant 112 : index
    %c0_4 = arith.constant 0 : index
    %4 = vector.load %arg2[%c112, %c0_4] : memref<152x384xf32, #tpu.memory_space<vmem>>, vector<32x128xf32>
    %c144 = arith.constant 144 : index
    %c0_5 = arith.constant 0 : index
    %5 = vector.load %arg2[%c144, %c0_5] : memref<152x384xf32, #tpu.memory_space<vmem>>, vector<1x256xf32>
    %c144_6 = arith.constant 144 : index
    %c256 = arith.constant 256 : index
    %6 = vector.load %arg2[%c144_6, %c256] : memref<152x384xf32, #tpu.memory_space<vmem>>, vector<1x128xf32>
    %c145 = arith.constant 145 : index
    %c0_7 = arith.constant 0 : index
    %7 = vector.load %arg2[%c145, %c0_7] : memref<152x384xf32, #tpu.memory_space<vmem>>, vector<1x128xf32>
    %c146 = arith.constant 146 : index
    %c0_8 = arith.constant 0 : index
    %8 = vector.load %arg2[%c146, %c0_8] : memref<152x384xf32, #tpu.memory_space<vmem>>, vector<1x256xf32>
    %c146_9 = arith.constant 146 : index
    %c256_10 = arith.constant 256 : index
    %9 = vector.load %arg2[%c146_9, %c256_10] : memref<152x384xf32, #tpu.memory_space<vmem>>, vector<1x128xf32>
    %c147 = arith.constant 147 : index
    %c0_11 = arith.constant 0 : index
    %10 = vector.load %arg2[%c147, %c0_11] : memref<152x384xf32, #tpu.memory_space<vmem>>, vector<1x256xf32>
    %c147_12 = arith.constant 147 : index
    %c256_13 = arith.constant 256 : index
    %11 = vector.load %arg2[%c147_12, %c256_13] : memref<152x384xf32, #tpu.memory_space<vmem>>, vector<1x128xf32>
    %c0_14 = arith.constant 0 : index
    %c0_15 = arith.constant 0 : index
    %12 = vector.load %arg0[%c0_14, %c0_15] : memref<8x4xf32, #tpu.memory_space<vmem>>, vector<8x4xf32>
    %cst = arith.constant dense<0.000000e+00> : vector<8x256xf32>
    %13 = tpu.matmul %12, %0, %cst {dimension_numbers = #tpu.dot_dimension_numbers<[1], [0], [0], [1], [0, 0, 1, 1], [], []>} : vector<8x4xf32>, vector<4x256xf32>, vector<8x256xf32> -> vector<8x256xf32>
    %c0_16 = arith.constant 0 : index
    %c0_17 = arith.constant 0 : index
    %14 = vector.load %arg1[%c0_16, %c0_17] : memref<8x6xf32, #tpu.memory_space<vmem>>, vector<8x6xf32>
    %cst_18 = arith.constant dense<0.000000e+00> : vector<8x256xf32>
    %15 = tpu.matmul %14, %1, %cst_18 {dimension_numbers = #tpu.dot_dimension_numbers<[1], [0], [0], [1], [0, 0, 1, 1], [], []>} : vector<8x6xf32>, vector<6x256xf32>, vector<8x256xf32> -> vector<8x256xf32>
    %16 = arith.addf %13, %15 : vector<8x256xf32>
    %17 = vector.broadcast %5 : vector<1x256xf32> to vector<8x256xf32>
    %18 = arith.addf %16, %17 : vector<8x256xf32>
    %cst_19 = arith.constant 0.000000e+00 : f32
    %19 = vector.broadcast %cst_19 : f32 to vector<1x64xf32>
    %cst_20 = arith.constant 0.000000e+00 : f32
    %20 = vector.broadcast %cst_20 : f32 to vector<1x32xf32>
    %21 = vector.extract_strided_slice %18 {offsets = [0, 0], sizes = [1, 256], strides = [1, 1]} : vector<8x256xf32> to vector<1x256xf32>
    %22 = math.tanh %21 : vector<1x256xf32>
    %23 = arith.mulf %22, %8 : vector<1x256xf32>
    %24 = arith.addf %23, %10 : vector<1x256xf32>
    %25 = vector.extract_strided_slice %24 {offsets = [0, 64], sizes = [1, 64], strides = [1, 1]} : vector<1x256xf32> to vector<1x64xf32>
    %26 = arith.mulf %25, %19 : vector<1x64xf32>
    %27 = vector.extract_strided_slice %24 {offsets = [0, 0], sizes = [1, 64], strides = [1, 1]} : vector<1x256xf32> to vector<1x64xf32>
    %28 = vector.extract_strided_slice %24 {offsets = [0, 128], sizes = [1, 64], strides = [1, 1]} : vector<1x256xf32> to vector<1x64xf32>
    %29 = arith.mulf %27, %28 : vector<1x64xf32>
    %30 = arith.addf %26, %29 : vector<1x64xf32>
    %31 = vector.extract_strided_slice %24 {offsets = [0, 192], sizes = [1, 64], strides = [1, 1]} : vector<1x256xf32> to vector<1x64xf32>
    %32 = math.tanh %30 : vector<1x64xf32>
    %33 = arith.mulf %31, %32 : vector<1x64xf32>
    %cst_21 = arith.constant dense<0.000000e+00> : vector<1x384xf32>
    %34 = tpu.matmul %33, %2, %cst_21 {dimension_numbers = #tpu.dot_dimension_numbers<[1], [0], [0], [1], [0, 0, 1, 1], [], []>} : vector<1x64xf32>, vector<64x384xf32>, vector<1x384xf32> -> vector<1x384xf32>
    %35 = vector.extract_strided_slice %18 {offsets = [1, 0], sizes = [1, 256], strides = [1, 1]} : vector<8x256xf32> to vector<1x256xf32>
    %36 = vector.extract_strided_slice %34 {offsets = [0, 0], sizes = [1, 256], strides = [1, 1]} : vector<1x384xf32> to vector<1x256xf32>
    %37 = arith.addf %35, %36 : vector<1x256xf32>
    %38 = math.tanh %37 : vector<1x256xf32>
    %39 = arith.mulf %38, %8 : vector<1x256xf32>
    %40 = arith.addf %39, %10 : vector<1x256xf32>
    %41 = vector.extract_strided_slice %40 {offsets = [0, 64], sizes = [1, 64], strides = [1, 1]} : vector<1x256xf32> to vector<1x64xf32>
    %42 = arith.mulf %41, %30 : vector<1x64xf32>
    %43 = vector.extract_strided_slice %40 {offsets = [0, 0], sizes = [1, 64], strides = [1, 1]} : vector<1x256xf32> to vector<1x64xf32>
    %44 = vector.extract_strided_slice %40 {offsets = [0, 128], sizes = [1, 64], strides = [1, 1]} : vector<1x256xf32> to vector<1x64xf32>
    %45 = arith.mulf %43, %44 : vector<1x64xf32>
    %46 = arith.addf %42, %45 : vector<1x64xf32>
    %47 = vector.extract_strided_slice %40 {offsets = [0, 192], sizes = [1, 64], strides = [1, 1]} : vector<1x256xf32> to vector<1x64xf32>
    %48 = math.tanh %46 : vector<1x64xf32>
    %49 = arith.mulf %47, %48 : vector<1x64xf32>
    %50 = vector.extract_strided_slice %34 {offsets = [0, 256], sizes = [1, 128], strides = [1, 1]} : vector<1x384xf32> to vector<1x128xf32>
    %51 = arith.addf %50, %6 : vector<1x128xf32>
    %52 = math.tanh %51 : vector<1x128xf32>
    %53 = arith.mulf %52, %9 : vector<1x128xf32>
    %54 = arith.addf %53, %11 : vector<1x128xf32>
    %55 = vector.extract_strided_slice %54 {offsets = [0, 32], sizes = [1, 32], strides = [1, 1]} : vector<1x128xf32> to vector<1x32xf32>
    %56 = arith.mulf %55, %20 : vector<1x32xf32>
    %57 = vector.extract_strided_slice %54 {offsets = [0, 0], sizes = [1, 32], strides = [1, 1]} : vector<1x128xf32> to vector<1x32xf32>
    %58 = vector.extract_strided_slice %54 {offsets = [0, 64], sizes = [1, 32], strides = [1, 1]} : vector<1x128xf32> to vector<1x32xf32>
    %59 = arith.mulf %57, %58 : vector<1x32xf32>
    %60 = arith.addf %56, %59 : vector<1x32xf32>
    %61 = vector.extract_strided_slice %54 {offsets = [0, 96], sizes = [1, 32], strides = [1, 1]} : vector<1x128xf32> to vector<1x32xf32>
    %62 = math.tanh %60 : vector<1x32xf32>
    %63 = arith.mulf %61, %62 : vector<1x32xf32>
    %cst_22 = arith.constant dense<0.000000e+00> : vector<1x384xf32>
    %64 = tpu.matmul %49, %2, %cst_22 {dimension_numbers = #tpu.dot_dimension_numbers<[1], [0], [0], [1], [0, 0, 1, 1], [], []>} : vector<1x64xf32>, vector<64x384xf32>, vector<1x384xf32> -> vector<1x384xf32>
    %cst_23 = arith.constant dense<0.000000e+00> : vector<1x128xf32>
    %65 = tpu.matmul %63, %3, %cst_23 {dimension_numbers = #tpu.dot_dimension_numbers<[1], [0], [0], [1], [0, 0, 1, 1], [], []>} : vector<1x32xf32>, vector<32x128xf32>, vector<1x128xf32> -> vector<1x128xf32>
    %66 = vector.extract_strided_slice %18 {offsets = [2, 0], sizes = [1, 256], strides = [1, 1]} : vector<8x256xf32> to vector<1x256xf32>
    %67 = vector.extract_strided_slice %64 {offsets = [0, 0], sizes = [1, 256], strides = [1, 1]} : vector<1x384xf32> to vector<1x256xf32>
    %68 = arith.addf %66, %67 : vector<1x256xf32>
    %69 = math.tanh %68 : vector<1x256xf32>
    %70 = arith.mulf %69, %8 : vector<1x256xf32>
    %71 = arith.addf %70, %10 : vector<1x256xf32>
    %72 = vector.extract_strided_slice %71 {offsets = [0, 64], sizes = [1, 64], strides = [1, 1]} : vector<1x256xf32> to vector<1x64xf32>
    %73 = arith.mulf %72, %46 : vector<1x64xf32>
    %74 = vector.extract_strided_slice %71 {offsets = [0, 0], sizes = [1, 64], strides = [1, 1]} : vector<1x256xf32> to vector<1x64xf32>
    %75 = vector.extract_strided_slice %71 {offsets = [0, 128], sizes = [1, 64], strides = [1, 1]} : vector<1x256xf32> to vector<1x64xf32>
    %76 = arith.mulf %74, %75 : vector<1x64xf32>
    %77 = arith.addf %73, %76 : vector<1x64xf32>
    %78 = vector.extract_strided_slice %71 {offsets = [0, 192], sizes = [1, 64], strides = [1, 1]} : vector<1x256xf32> to vector<1x64xf32>
    %79 = math.tanh %77 : vector<1x64xf32>
    %80 = arith.mulf %78, %79 : vector<1x64xf32>
    %81 = vector.extract_strided_slice %64 {offsets = [0, 256], sizes = [1, 128], strides = [1, 1]} : vector<1x384xf32> to vector<1x128xf32>
    %82 = arith.addf %81, %65 : vector<1x128xf32>
    %83 = arith.addf %82, %6 : vector<1x128xf32>
    %84 = math.tanh %83 : vector<1x128xf32>
    %85 = arith.mulf %84, %9 : vector<1x128xf32>
    %86 = arith.addf %85, %11 : vector<1x128xf32>
    %87 = vector.extract_strided_slice %86 {offsets = [0, 32], sizes = [1, 32], strides = [1, 1]} : vector<1x128xf32> to vector<1x32xf32>
    %88 = arith.mulf %87, %60 : vector<1x32xf32>
    %89 = vector.extract_strided_slice %86 {offsets = [0, 0], sizes = [1, 32], strides = [1, 1]} : vector<1x128xf32> to vector<1x32xf32>
    %90 = vector.extract_strided_slice %86 {offsets = [0, 64], sizes = [1, 32], strides = [1, 1]} : vector<1x128xf32> to vector<1x32xf32>
    %91 = arith.mulf %89, %90 : vector<1x32xf32>
    %92 = arith.addf %88, %91 : vector<1x32xf32>
    %93 = vector.extract_strided_slice %86 {offsets = [0, 96], sizes = [1, 32], strides = [1, 1]} : vector<1x128xf32> to vector<1x32xf32>
    %94 = math.tanh %92 : vector<1x32xf32>
    %95 = arith.mulf %93, %94 : vector<1x32xf32>
    %cst_24 = arith.constant dense<0.000000e+00> : vector<1x384xf32>
    %96 = tpu.matmul %80, %2, %cst_24 {dimension_numbers = #tpu.dot_dimension_numbers<[1], [0], [0], [1], [0, 0, 1, 1], [], []>} : vector<1x64xf32>, vector<64x384xf32>, vector<1x384xf32> -> vector<1x384xf32>
    %cst_25 = arith.constant dense<0.000000e+00> : vector<1x128xf32>
    %97 = tpu.matmul %95, %3, %cst_25 {dimension_numbers = #tpu.dot_dimension_numbers<[1], [0], [0], [1], [0, 0, 1, 1], [], []>} : vector<1x32xf32>, vector<32x128xf32>, vector<1x128xf32> -> vector<1x128xf32>
    %98 = vector.extract_strided_slice %18 {offsets = [3, 0], sizes = [1, 256], strides = [1, 1]} : vector<8x256xf32> to vector<1x256xf32>
    %99 = vector.extract_strided_slice %96 {offsets = [0, 0], sizes = [1, 256], strides = [1, 1]} : vector<1x384xf32> to vector<1x256xf32>
    %100 = arith.addf %98, %99 : vector<1x256xf32>
    %101 = math.tanh %100 : vector<1x256xf32>
    %102 = arith.mulf %101, %8 : vector<1x256xf32>
    %103 = arith.addf %102, %10 : vector<1x256xf32>
    %104 = vector.extract_strided_slice %103 {offsets = [0, 64], sizes = [1, 64], strides = [1, 1]} : vector<1x256xf32> to vector<1x64xf32>
    %105 = arith.mulf %104, %77 : vector<1x64xf32>
    %106 = vector.extract_strided_slice %103 {offsets = [0, 0], sizes = [1, 64], strides = [1, 1]} : vector<1x256xf32> to vector<1x64xf32>
    %107 = vector.extract_strided_slice %103 {offsets = [0, 128], sizes = [1, 64], strides = [1, 1]} : vector<1x256xf32> to vector<1x64xf32>
    %108 = arith.mulf %106, %107 : vector<1x64xf32>
    %109 = arith.addf %105, %108 : vector<1x64xf32>
    %110 = vector.extract_strided_slice %103 {offsets = [0, 192], sizes = [1, 64], strides = [1, 1]} : vector<1x256xf32> to vector<1x64xf32>
    %111 = math.tanh %109 : vector<1x64xf32>
    %112 = arith.mulf %110, %111 : vector<1x64xf32>
    %113 = vector.extract_strided_slice %96 {offsets = [0, 256], sizes = [1, 128], strides = [1, 1]} : vector<1x384xf32> to vector<1x128xf32>
    %114 = arith.addf %113, %97 : vector<1x128xf32>
    %115 = arith.addf %114, %6 : vector<1x128xf32>
    %116 = math.tanh %115 : vector<1x128xf32>
    %117 = arith.mulf %116, %9 : vector<1x128xf32>
    %118 = arith.addf %117, %11 : vector<1x128xf32>
    %119 = vector.extract_strided_slice %118 {offsets = [0, 32], sizes = [1, 32], strides = [1, 1]} : vector<1x128xf32> to vector<1x32xf32>
    %120 = arith.mulf %119, %92 : vector<1x32xf32>
    %121 = vector.extract_strided_slice %118 {offsets = [0, 0], sizes = [1, 32], strides = [1, 1]} : vector<1x128xf32> to vector<1x32xf32>
    %122 = vector.extract_strided_slice %118 {offsets = [0, 64], sizes = [1, 32], strides = [1, 1]} : vector<1x128xf32> to vector<1x32xf32>
    %123 = arith.mulf %121, %122 : vector<1x32xf32>
    %124 = arith.addf %120, %123 : vector<1x32xf32>
    %125 = vector.extract_strided_slice %118 {offsets = [0, 96], sizes = [1, 32], strides = [1, 1]} : vector<1x128xf32> to vector<1x32xf32>
    %126 = math.tanh %124 : vector<1x32xf32>
    %127 = arith.mulf %125, %126 : vector<1x32xf32>
    %cst_26 = arith.constant dense<0.000000e+00> : vector<1x384xf32>
    %128 = tpu.matmul %112, %2, %cst_26 {dimension_numbers = #tpu.dot_dimension_numbers<[1], [0], [0], [1], [0, 0, 1, 1], [], []>} : vector<1x64xf32>, vector<64x384xf32>, vector<1x384xf32> -> vector<1x384xf32>
    %cst_27 = arith.constant dense<0.000000e+00> : vector<1x128xf32>
    %129 = tpu.matmul %127, %3, %cst_27 {dimension_numbers = #tpu.dot_dimension_numbers<[1], [0], [0], [1], [0, 0, 1, 1], [], []>} : vector<1x32xf32>, vector<32x128xf32>, vector<1x128xf32> -> vector<1x128xf32>
    %130 = vector.extract_strided_slice %18 {offsets = [4, 0], sizes = [1, 256], strides = [1, 1]} : vector<8x256xf32> to vector<1x256xf32>
    %131 = vector.extract_strided_slice %128 {offsets = [0, 0], sizes = [1, 256], strides = [1, 1]} : vector<1x384xf32> to vector<1x256xf32>
    %132 = arith.addf %130, %131 : vector<1x256xf32>
    %133 = math.tanh %132 : vector<1x256xf32>
    %134 = arith.mulf %133, %8 : vector<1x256xf32>
    %135 = arith.addf %134, %10 : vector<1x256xf32>
    %136 = vector.extract_strided_slice %135 {offsets = [0, 64], sizes = [1, 64], strides = [1, 1]} : vector<1x256xf32> to vector<1x64xf32>
    %137 = arith.mulf %136, %109 : vector<1x64xf32>
    %138 = vector.extract_strided_slice %135 {offsets = [0, 0], sizes = [1, 64], strides = [1, 1]} : vector<1x256xf32> to vector<1x64xf32>
    %139 = vector.extract_strided_slice %135 {offsets = [0, 128], sizes = [1, 64], strides = [1, 1]} : vector<1x256xf32> to vector<1x64xf32>
    %140 = arith.mulf %138, %139 : vector<1x64xf32>
    %141 = arith.addf %137, %140 : vector<1x64xf32>
    %142 = vector.extract_strided_slice %135 {offsets = [0, 192], sizes = [1, 64], strides = [1, 1]} : vector<1x256xf32> to vector<1x64xf32>
    %143 = math.tanh %141 : vector<1x64xf32>
    %144 = arith.mulf %142, %143 : vector<1x64xf32>
    %145 = vector.extract_strided_slice %128 {offsets = [0, 256], sizes = [1, 128], strides = [1, 1]} : vector<1x384xf32> to vector<1x128xf32>
    %146 = arith.addf %145, %129 : vector<1x128xf32>
    %147 = arith.addf %146, %6 : vector<1x128xf32>
    %148 = math.tanh %147 : vector<1x128xf32>
    %149 = arith.mulf %148, %9 : vector<1x128xf32>
    %150 = arith.addf %149, %11 : vector<1x128xf32>
    %151 = vector.extract_strided_slice %150 {offsets = [0, 32], sizes = [1, 32], strides = [1, 1]} : vector<1x128xf32> to vector<1x32xf32>
    %152 = arith.mulf %151, %124 : vector<1x32xf32>
    %153 = vector.extract_strided_slice %150 {offsets = [0, 0], sizes = [1, 32], strides = [1, 1]} : vector<1x128xf32> to vector<1x32xf32>
    %154 = vector.extract_strided_slice %150 {offsets = [0, 64], sizes = [1, 32], strides = [1, 1]} : vector<1x128xf32> to vector<1x32xf32>
    %155 = arith.mulf %153, %154 : vector<1x32xf32>
    %156 = arith.addf %152, %155 : vector<1x32xf32>
    %157 = vector.extract_strided_slice %150 {offsets = [0, 96], sizes = [1, 32], strides = [1, 1]} : vector<1x128xf32> to vector<1x32xf32>
    %158 = math.tanh %156 : vector<1x32xf32>
    %159 = arith.mulf %157, %158 : vector<1x32xf32>
    %cst_28 = arith.constant dense<0.000000e+00> : vector<1x384xf32>
    %160 = tpu.matmul %144, %2, %cst_28 {dimension_numbers = #tpu.dot_dimension_numbers<[1], [0], [0], [1], [0, 0, 1, 1], [], []>} : vector<1x64xf32>, vector<64x384xf32>, vector<1x384xf32> -> vector<1x384xf32>
    %cst_29 = arith.constant dense<0.000000e+00> : vector<1x128xf32>
    %161 = tpu.matmul %159, %3, %cst_29 {dimension_numbers = #tpu.dot_dimension_numbers<[1], [0], [0], [1], [0, 0, 1, 1], [], []>} : vector<1x32xf32>, vector<32x128xf32>, vector<1x128xf32> -> vector<1x128xf32>
    %162 = vector.extract_strided_slice %18 {offsets = [5, 0], sizes = [1, 256], strides = [1, 1]} : vector<8x256xf32> to vector<1x256xf32>
    %163 = vector.extract_strided_slice %160 {offsets = [0, 0], sizes = [1, 256], strides = [1, 1]} : vector<1x384xf32> to vector<1x256xf32>
    %164 = arith.addf %162, %163 : vector<1x256xf32>
    %165 = math.tanh %164 : vector<1x256xf32>
    %166 = arith.mulf %165, %8 : vector<1x256xf32>
    %167 = arith.addf %166, %10 : vector<1x256xf32>
    %168 = vector.extract_strided_slice %167 {offsets = [0, 64], sizes = [1, 64], strides = [1, 1]} : vector<1x256xf32> to vector<1x64xf32>
    %169 = arith.mulf %168, %141 : vector<1x64xf32>
    %170 = vector.extract_strided_slice %167 {offsets = [0, 0], sizes = [1, 64], strides = [1, 1]} : vector<1x256xf32> to vector<1x64xf32>
    %171 = vector.extract_strided_slice %167 {offsets = [0, 128], sizes = [1, 64], strides = [1, 1]} : vector<1x256xf32> to vector<1x64xf32>
    %172 = arith.mulf %170, %171 : vector<1x64xf32>
    %173 = arith.addf %169, %172 : vector<1x64xf32>
    %174 = vector.extract_strided_slice %167 {offsets = [0, 192], sizes = [1, 64], strides = [1, 1]} : vector<1x256xf32> to vector<1x64xf32>
    %175 = math.tanh %173 : vector<1x64xf32>
    %176 = arith.mulf %174, %175 : vector<1x64xf32>
    %177 = vector.extract_strided_slice %160 {offsets = [0, 256], sizes = [1, 128], strides = [1, 1]} : vector<1x384xf32> to vector<1x128xf32>
    %178 = arith.addf %177, %161 : vector<1x128xf32>
    %179 = arith.addf %178, %6 : vector<1x128xf32>
    %180 = math.tanh %179 : vector<1x128xf32>
    %181 = arith.mulf %180, %9 : vector<1x128xf32>
    %182 = arith.addf %181, %11 : vector<1x128xf32>
    %183 = vector.extract_strided_slice %182 {offsets = [0, 32], sizes = [1, 32], strides = [1, 1]} : vector<1x128xf32> to vector<1x32xf32>
    %184 = arith.mulf %183, %156 : vector<1x32xf32>
    %185 = vector.extract_strided_slice %182 {offsets = [0, 0], sizes = [1, 32], strides = [1, 1]} : vector<1x128xf32> to vector<1x32xf32>
    %186 = vector.extract_strided_slice %182 {offsets = [0, 64], sizes = [1, 32], strides = [1, 1]} : vector<1x128xf32> to vector<1x32xf32>
    %187 = arith.mulf %185, %186 : vector<1x32xf32>
    %188 = arith.addf %184, %187 : vector<1x32xf32>
    %189 = vector.extract_strided_slice %182 {offsets = [0, 96], sizes = [1, 32], strides = [1, 1]} : vector<1x128xf32> to vector<1x32xf32>
    %190 = math.tanh %188 : vector<1x32xf32>
    %191 = arith.mulf %189, %190 : vector<1x32xf32>
    %cst_30 = arith.constant dense<0.000000e+00> : vector<1x384xf32>
    %192 = tpu.matmul %176, %2, %cst_30 {dimension_numbers = #tpu.dot_dimension_numbers<[1], [0], [0], [1], [0, 0, 1, 1], [], []>} : vector<1x64xf32>, vector<64x384xf32>, vector<1x384xf32> -> vector<1x384xf32>
    %cst_31 = arith.constant dense<0.000000e+00> : vector<1x128xf32>
    %193 = tpu.matmul %191, %3, %cst_31 {dimension_numbers = #tpu.dot_dimension_numbers<[1], [0], [0], [1], [0, 0, 1, 1], [], []>} : vector<1x32xf32>, vector<32x128xf32>, vector<1x128xf32> -> vector<1x128xf32>
    %194 = vector.extract_strided_slice %18 {offsets = [6, 0], sizes = [1, 256], strides = [1, 1]} : vector<8x256xf32> to vector<1x256xf32>
    %195 = vector.extract_strided_slice %192 {offsets = [0, 0], sizes = [1, 256], strides = [1, 1]} : vector<1x384xf32> to vector<1x256xf32>
    %196 = arith.addf %194, %195 : vector<1x256xf32>
    %197 = math.tanh %196 : vector<1x256xf32>
    %198 = arith.mulf %197, %8 : vector<1x256xf32>
    %199 = arith.addf %198, %10 : vector<1x256xf32>
    %200 = vector.extract_strided_slice %199 {offsets = [0, 64], sizes = [1, 64], strides = [1, 1]} : vector<1x256xf32> to vector<1x64xf32>
    %201 = arith.mulf %200, %173 : vector<1x64xf32>
    %202 = vector.extract_strided_slice %199 {offsets = [0, 0], sizes = [1, 64], strides = [1, 1]} : vector<1x256xf32> to vector<1x64xf32>
    %203 = vector.extract_strided_slice %199 {offsets = [0, 128], sizes = [1, 64], strides = [1, 1]} : vector<1x256xf32> to vector<1x64xf32>
    %204 = arith.mulf %202, %203 : vector<1x64xf32>
    %205 = arith.addf %201, %204 : vector<1x64xf32>
    %206 = vector.extract_strided_slice %199 {offsets = [0, 192], sizes = [1, 64], strides = [1, 1]} : vector<1x256xf32> to vector<1x64xf32>
    %207 = math.tanh %205 : vector<1x64xf32>
    %208 = arith.mulf %206, %207 : vector<1x64xf32>
    %209 = vector.extract_strided_slice %192 {offsets = [0, 256], sizes = [1, 128], strides = [1, 1]} : vector<1x384xf32> to vector<1x128xf32>
    %210 = arith.addf %209, %193 : vector<1x128xf32>
    %211 = arith.addf %210, %6 : vector<1x128xf32>
    %212 = math.tanh %211 : vector<1x128xf32>
    %213 = arith.mulf %212, %9 : vector<1x128xf32>
    %214 = arith.addf %213, %11 : vector<1x128xf32>
    %215 = vector.extract_strided_slice %214 {offsets = [0, 32], sizes = [1, 32], strides = [1, 1]} : vector<1x128xf32> to vector<1x32xf32>
    %216 = arith.mulf %215, %188 : vector<1x32xf32>
    %217 = vector.extract_strided_slice %214 {offsets = [0, 0], sizes = [1, 32], strides = [1, 1]} : vector<1x128xf32> to vector<1x32xf32>
    %218 = vector.extract_strided_slice %214 {offsets = [0, 64], sizes = [1, 32], strides = [1, 1]} : vector<1x128xf32> to vector<1x32xf32>
    %219 = arith.mulf %217, %218 : vector<1x32xf32>
    %220 = arith.addf %216, %219 : vector<1x32xf32>
    %221 = vector.extract_strided_slice %214 {offsets = [0, 96], sizes = [1, 32], strides = [1, 1]} : vector<1x128xf32> to vector<1x32xf32>
    %222 = math.tanh %220 : vector<1x32xf32>
    %223 = arith.mulf %221, %222 : vector<1x32xf32>
    %cst_32 = arith.constant dense<0.000000e+00> : vector<1x384xf32>
    %224 = tpu.matmul %208, %2, %cst_32 {dimension_numbers = #tpu.dot_dimension_numbers<[1], [0], [0], [1], [0, 0, 1, 1], [], []>} : vector<1x64xf32>, vector<64x384xf32>, vector<1x384xf32> -> vector<1x384xf32>
    %cst_33 = arith.constant dense<0.000000e+00> : vector<1x128xf32>
    %225 = tpu.matmul %223, %3, %cst_33 {dimension_numbers = #tpu.dot_dimension_numbers<[1], [0], [0], [1], [0, 0, 1, 1], [], []>} : vector<1x32xf32>, vector<32x128xf32>, vector<1x128xf32> -> vector<1x128xf32>
    %226 = vector.extract_strided_slice %18 {offsets = [7, 0], sizes = [1, 256], strides = [1, 1]} : vector<8x256xf32> to vector<1x256xf32>
    %227 = vector.extract_strided_slice %224 {offsets = [0, 0], sizes = [1, 256], strides = [1, 1]} : vector<1x384xf32> to vector<1x256xf32>
    %228 = arith.addf %226, %227 : vector<1x256xf32>
    %229 = math.tanh %228 : vector<1x256xf32>
    %230 = arith.mulf %229, %8 : vector<1x256xf32>
    %231 = arith.addf %230, %10 : vector<1x256xf32>
    %232 = vector.extract_strided_slice %231 {offsets = [0, 64], sizes = [1, 64], strides = [1, 1]} : vector<1x256xf32> to vector<1x64xf32>
    %233 = arith.mulf %232, %205 : vector<1x64xf32>
    %234 = vector.extract_strided_slice %231 {offsets = [0, 0], sizes = [1, 64], strides = [1, 1]} : vector<1x256xf32> to vector<1x64xf32>
    %235 = vector.extract_strided_slice %231 {offsets = [0, 128], sizes = [1, 64], strides = [1, 1]} : vector<1x256xf32> to vector<1x64xf32>
    %236 = arith.mulf %234, %235 : vector<1x64xf32>
    %237 = arith.addf %233, %236 : vector<1x64xf32>
    %238 = vector.extract_strided_slice %231 {offsets = [0, 192], sizes = [1, 64], strides = [1, 1]} : vector<1x256xf32> to vector<1x64xf32>
    %239 = math.tanh %237 : vector<1x64xf32>
    %240 = arith.mulf %238, %239 : vector<1x64xf32>
    %241 = vector.extract_strided_slice %224 {offsets = [0, 256], sizes = [1, 128], strides = [1, 1]} : vector<1x384xf32> to vector<1x128xf32>
    %242 = arith.addf %241, %225 : vector<1x128xf32>
    %243 = arith.addf %242, %6 : vector<1x128xf32>
    %244 = math.tanh %243 : vector<1x128xf32>
    %245 = arith.mulf %244, %9 : vector<1x128xf32>
    %246 = arith.addf %245, %11 : vector<1x128xf32>
    %247 = vector.extract_strided_slice %246 {offsets = [0, 32], sizes = [1, 32], strides = [1, 1]} : vector<1x128xf32> to vector<1x32xf32>
    %248 = arith.mulf %247, %220 : vector<1x32xf32>
    %249 = vector.extract_strided_slice %246 {offsets = [0, 0], sizes = [1, 32], strides = [1, 1]} : vector<1x128xf32> to vector<1x32xf32>
    %250 = vector.extract_strided_slice %246 {offsets = [0, 64], sizes = [1, 32], strides = [1, 1]} : vector<1x128xf32> to vector<1x32xf32>
    %251 = arith.mulf %249, %250 : vector<1x32xf32>
    %252 = arith.addf %248, %251 : vector<1x32xf32>
    %253 = vector.extract_strided_slice %246 {offsets = [0, 96], sizes = [1, 32], strides = [1, 1]} : vector<1x128xf32> to vector<1x32xf32>
    %254 = math.tanh %252 : vector<1x32xf32>
    %255 = arith.mulf %253, %254 : vector<1x32xf32>
    %cst_34 = arith.constant dense<0.000000e+00> : vector<1x384xf32>
    %256 = tpu.matmul %240, %2, %cst_34 {dimension_numbers = #tpu.dot_dimension_numbers<[1], [0], [0], [1], [0, 0, 1, 1], [], []>} : vector<1x64xf32>, vector<64x384xf32>, vector<1x384xf32> -> vector<1x384xf32>
    %cst_35 = arith.constant dense<0.000000e+00> : vector<1x128xf32>
    %257 = tpu.matmul %255, %3, %cst_35 {dimension_numbers = #tpu.dot_dimension_numbers<[1], [0], [0], [1], [0, 0, 1, 1], [], []>} : vector<1x32xf32>, vector<32x128xf32>, vector<1x128xf32> -> vector<1x128xf32>
    %258 = vector.extract_strided_slice %256 {offsets = [0, 256], sizes = [1, 128], strides = [1, 1]} : vector<1x384xf32> to vector<1x128xf32>
    %259 = arith.addf %258, %257 : vector<1x128xf32>
    %260 = arith.addf %259, %6 : vector<1x128xf32>
    %261 = math.tanh %260 : vector<1x128xf32>
    %262 = arith.mulf %261, %9 : vector<1x128xf32>
    %263 = arith.addf %262, %11 : vector<1x128xf32>
    %264 = vector.extract_strided_slice %263 {offsets = [0, 32], sizes = [1, 32], strides = [1, 1]} : vector<1x128xf32> to vector<1x32xf32>
    %265 = arith.mulf %264, %252 : vector<1x32xf32>
    %266 = vector.extract_strided_slice %263 {offsets = [0, 0], sizes = [1, 32], strides = [1, 1]} : vector<1x128xf32> to vector<1x32xf32>
    %267 = vector.extract_strided_slice %263 {offsets = [0, 64], sizes = [1, 32], strides = [1, 1]} : vector<1x128xf32> to vector<1x32xf32>
    %268 = arith.mulf %266, %267 : vector<1x32xf32>
    %269 = arith.addf %265, %268 : vector<1x32xf32>
    %270 = vector.extract_strided_slice %263 {offsets = [0, 96], sizes = [1, 32], strides = [1, 1]} : vector<1x128xf32> to vector<1x32xf32>
    %271 = math.tanh %269 : vector<1x32xf32>
    %272 = arith.mulf %270, %271 : vector<1x32xf32>
    %cst_36 = arith.constant dense<0.000000e+00> : vector<1x128xf32>
    %273 = tpu.matmul %272, %4, %cst_36 {dimension_numbers = #tpu.dot_dimension_numbers<[1], [0], [0], [1], [0, 0, 1, 1], [], []>} : vector<1x32xf32>, vector<32x128xf32>, vector<1x128xf32> -> vector<1x128xf32>
    %274 = arith.addf %273, %7 : vector<1x128xf32>
    %c0_37 = arith.constant 0 : index
    %c0_38 = arith.constant 0 : index
    %275 = vector.load %arg3[%c0_37, %c0_38] : memref<1x128xf32, #tpu.memory_space<vmem>>, vector<1x128xf32>
    tpu.vector_store %arg3[%c0_37, %c0_38], %274 {strides = array<i32>} : memref<1x128xf32, #tpu.memory_space<vmem>>, vector<1x128xf32>,
    return
  }
}

</mosaic_0001>

<llo_original>
// kernel: tpu_custom_call.1
$region0: #{tpu_custom_call.1}
  #allocation0 [shape = 'u32[]', space=smem, size = 0x4, offset = 0x4, fixed_abs, tag = 'smem constant byte address 0x4 - core index']
  #allocation1 [shape = 'u32[72,128]{1,0:T(1,128)}', space=vmem, size = 0x9000, scoped, tag = 'internal scratch']
  %s0 = inlined_call_operand.vmem [shape: f32[8,4], index: 0, kind: input, shape index: {}]
  %s1 = inlined_call_operand.vmem [shape: f32[8,6], index: 1, kind: input, shape index: {}]
  %s2 = inlined_call_operand.hbm [shape: f32[152,384], index: 2, kind: input, shape index: {}]
  %s3 = inlined_call_operand.hbm [shape: f32[1,128], index: 3, kind: output, shape index: {}]
  %s4 = sld [smem:[#allocation0]]
  $region26: #{tpu_custom_call.1} parent=0
    _
  %s6 = ssub.s32 1, %s4
  %s7 = scalar_select 0, %s6, %s4
  $region1: #{tpu_custom_call.1} parent=0
    #allocation2 [shape = 'u8[233472]{0}', space=vmem, size = 0x39000, scoped, tag = 'input window, operand 2, single buffered']
    #allocation3 [shape = 's32[1]{0}', space=sflag, size = 0x4, scoped, tag = 'scoped memory for tpu_custom_call.1']
    #allocation4 [shape = 's32[1]{0}', space=sflag, size = 0x4, scoped, tag = 'scoped memory for tpu_custom_call.1']
    #allocation5 [shape = 'u8[512]{0}', space=vmem, size = 0x400, scoped, tag = 'output window, operand 0, single buffered']
    %8 = vsyncpa [#allocation3], 0
    %9 = vsyncpa [#allocation4], 0
    // Predicated region
    $region2: #{tpu_custom_call.1} parent=1 // pred_check
      _
    $region3: #{tpu_custom_call.1} parent=1 // pred_check_branch
      %11 = sbr.rel (0) target = $region5
    $region4: #{tpu_custom_call.1} parent=1 // pred_region
      _
    $region5: #{tpu_custom_call.1} parent=1 // pred_fallthru
      _
    // Predicated region
    $region6: #{tpu_custom_call.1} parent=1 // pred_check
      _
    $region7: #{tpu_custom_call.1} parent=1 // pred_check_branch
      %13 = sbr.rel (0) target = $region9
    $region8: #{tpu_custom_call.1} parent=1 // pred_region
      _
    $region9: #{tpu_custom_call.1} parent=1 // pred_fallthru
      _
    // Predicated region
    $region10: #{tpu_custom_call.1} parent=1 // pred_check
      _
    $region11: #{tpu_custom_call.1} parent=1 // pred_check_branch
      %15 = sbr.rel (0) target = $region13
    $region12: #{tpu_custom_call.1} parent=1 // pred_region
      %17 = vsyncadd [#allocation3], 0
      %s18 = sshll.u32 %s2, 4
      %s19 = int_to_ptr.hbm [resolvable:$true] %s18
      %s20 = sshll.u32 [#allocation2], 4
      %s21 = int_to_ptr.vmem [resolvable:$true] %s20
      %26 = dma.hbm_to_vmem [thread:$0]  %s19, 7296, %s21, [#allocation3], 384, 384, 24
    $region13: #{tpu_custom_call.1} parent=1 // pred_fallthru
      _
    // Predicated region
    $region14: #{tpu_custom_call.1} parent=1 // pred_check
      _
    $region15: #{tpu_custom_call.1} parent=1 // pred_check_branch
      %28 = sbr.rel (0) target = $region17
    $region16: #{tpu_custom_call.1} parent=1 // pred_region
      %30 = dma.done [#allocation3], 7296
    $region17: #{tpu_custom_call.1} parent=1 // pred_fallthru
      _
    %v31 = vld [vmem:[#allocation2] sm:$0xf]
    %v32 = vld [vmem:[#allocation2 + $0x8] sm:$0xf]
    %v33 = vld [vmem:[#allocation2 + $0x18] sm:$0x3f]
    %v34 = vld [vmem:[#allocation2 + $0x20] sm:$0x3f]
    %v35 = vld [vmem:[#allocation2 + $0x30] sm:$0xff]
    %v36 = vld [vmem:[#allocation2 + $0x38] sm:$0xff]
    %v37 = vld [vmem:[#allocation2 + $0x40] sm:$0xff]
    %v38 = vld [vmem:[#allocation2 + $0x48] sm:$0xff]
    %v39 = vld [vmem:[#allocation2 + $0x50] sm:$0xff]
    %v40 = vld [vmem:[#allocation2 + $0x58] sm:$0xff]
    %v41 = vld [vmem:[#allocation2 + $0x60] sm:$0xff]
    %v42 = vld [vmem:[#allocation2 + $0x68] sm:$0xff]
    %v43 = vld [vmem:[#allocation2 + $0x70] sm:$0xff]
    %v44 = vld [vmem:[#allocation2 + $0x78] sm:$0xff]
    %v45 = vld [vmem:[#allocation2 + $0x80] sm:$0xff]
    %v46 = vld [vmem:[#allocation2 + $0x88] sm:$0xff]
    %v47 = vld [vmem:[#allocation2 + $0x90] sm:$0xff]
    %v48 = vld [vmem:[#allocation2 + $0x98] sm:$0xff]
    %v49 = vld [vmem:[#allocation2 + $0xa0] sm:$0xff]
    %v50 = vld [vmem:[#allocation2 + $0xa8] sm:$0xff]
    %v51 = vld [vmem:[#allocation2 + $0xb0] sm:$0xff]
    %v52 = vld [vmem:[#allocation2 + $0xb8] sm:$0xff]
    %v53 = vld [vmem:[#allocation2 + $0xc0] sm:$0xff]
    %v54 = vld [vmem:[#allocation2 + $0xc8] sm:$0xff]
    %v55 = vld [vmem:[#allocation2 + $0xd0] sm:$0xff]
    %v56 = vld [vmem:[#allocation2 + $0xd8] sm:$0xff]
    %v57 = vld [vmem:[#allocation2 + $0xe0] sm:$0xff]
    %v58 = vld [vmem:[#allocation2 + $0xe8] sm:$0xff]
    %v59 = vld [vmem:[#allocation2 + $0xf0] sm:$0xff]
    %v60 = vld [vmem:[#allocation2 + $0x108] sm:$0xff]
    %v61 = vld [vmem:[#allocation2 + $0x120] sm:$0xff]
    %v62 = vld [vmem:[#allocation2 + $0x138] sm:$0xff]
    %v63 = vld [vmem:[#allocation2 + $0x150] sm:$0xff]
    %v64 = vld [vmem:[#allocation2 + $0x168] sm:$0xff]
    %v65 = vld [vmem:[#allocation2 + $0x180] sm:$0xff]
    %v66 = vld [vmem:[#allocation2 + $0x198] sm:$0xff]
    %s67 = scalar_lea.vmem [#allocation2], 432
    %v68 = vld [vmem:[%s67] ss:$8 sm:$0x3]
    %v69 = vld [vmem:[#allocation2 + $0x1c0] ss:$0 sm:$0xff]
    %v70 = vld [vmem:[#allocation2 + $0x1b1] ss:$0 sm:$0xff]
    %s71 = scalar_lea.vmem [#allocation2], 434
    %v72 = vld [vmem:[%s71] ss:$8 sm:$0x3]
    %v73 = vld [vmem:[#allocation2 + $0x1c2] ss:$0 sm:$0xff]
    %s74 = scalar_lea.vmem [#allocation2], 435
    %v75 = vld [vmem:[%s74] ss:$8 sm:$0x3]
    %v76 = vld [vmem:[#allocation2 + $0x1c3] ss:$0 sm:$0xff]
    %v77 = vld [vmem:[%s0] sm:$0xff]
    %v78 = vld [vmem:[%s1] sm:$0xff]
    %vm79 = vcmask 48128
    %v81 = vsel %vm79, %v78, 0
    %vm83 = vcmask 1045504
    %v85 = vsel %vm83, %v33, 0
    %v88 = vsel %vm83, %v34, 0
    %90 = vmatpush.msra.mxu0 0.0
    %91 = vmatpush.msra.mxu0 0.0
    %92 = vmatpush.msra.mxu0 0.0
    %93 = vmatpush.msra.mxu0 0.0
    %94 = vmatpush.msra.mxu0 0.0
    %95 = vmatpush.msra.mxu0 0.0
    %96 = vmatpush.msra.mxu0 0.0
    %97 = vmatpush.msra.mxu0 0.0
    %98 = vmatpush.msra.mxu0 0.0
    %99 = vmatpush.msra.mxu0 0.0
    %100 = vmatpush.msra.mxu0 0.0
    %101 = vmatpush.msra.mxu0 0.0
    %102 = vmatpush.msra.mxu0 0.0
    %103 = vmatpush.msra.mxu0 0.0
    %104 = vmatpush.msra.mxu0 0.0
    %105 = vmatpush.msra.mxu0 %v85
    %106 = vmatmul.f32.gmra.mxu0 %v81
    %v107 = vpop.f32.mrf.mxu0
    %v108 = vadd.f32 0.0, %v107
    %109 = vdwg.mxu0
    %110 = vmatpush.msra.mxu0 0.0
    %111 = vmatpush.msra.mxu0 0.0
    %112 = vmatpush.msra.mxu0 0.0
    %113 = vmatpush.msra.mxu0 0.0
    %114 = vmatpush.msra.mxu0 0.0
    %115 = vmatpush.msra.mxu0 0.0
    %116 = vmatpush.msra.mxu0 0.0
    %117 = vmatpush.msra.mxu0 0.0
    %118 = vmatpush.msra.mxu0 0.0
    %119 = vmatpush.msra.mxu0 0.0
    %120 = vmatpush.msra.mxu0 0.0
    %121 = vmatpush.msra.mxu0 0.0
    %122 = vmatpush.msra.mxu0 0.0
    %123 = vmatpush.msra.mxu0 0.0
    %124 = vmatpush.msra.mxu0 0.0
    %125 = vmatpush.msra.mxu0 %v88
    %126 = vmatmul.f32.gmra.mxu0 %v81
    %v127 = vpop.f32.mrf.mxu0
    %v128 = vadd.f32 0.0, %v127
    %129 = vdwg.mxu0
    %vm130 = vcmask 31744
    %v132 = vsel %vm130, %v77, 0
    %vm134 = vcmask 1043456
    %v136 = vsel %vm134, %v31, 0
    %v139 = vsel %vm134, %v32, 0
    %141 = vmatpush.msra.mxu0 0.0
    %142 = vmatpush.msra.mxu0 0.0
    %143 = vmatpush.msra.mxu0 0.0
    %144 = vmatpush.msra.mxu0 0.0
    %145 = vmatpush.msra.mxu0 0.0
    %146 = vmatpush.msra.mxu0 0.0
    %147 = vmatpush.msra.mxu0 0.0
    %148 = vmatpush.msra.mxu0 0.0
    %149 = vmatpush.msra.mxu0 0.0
    %150 = vmatpush.msra.mxu0 0.0
    %151 = vmatpush.msra.mxu0 0.0
    %152 = vmatpush.msra.mxu0 0.0
    %153 = vmatpush.msra.mxu0 0.0
    %154 = vmatpush.msra.mxu0 0.0
    %155 = vmatpush.msra.mxu0 0.0
    %156 = vmatpush.msra.mxu0 %v136
    %157 = vmatmul.f32.gmra.mxu0 %v132
    %v158 = vpop.f32.mrf.mxu0
    %v159 = vadd.f32 %v108, %v158
    %160 = vdwg.mxu0
    %161 = vmatpush.msra.mxu0 0.0
    %162 = vmatpush.msra.mxu0 0.0
    %163 = vmatpush.msra.mxu0 0.0
    %164 = vmatpush.msra.mxu0 0.0
    %165 = vmatpush.msra.mxu0 0.0
    %166 = vmatpush.msra.mxu0 0.0
    %167 = vmatpush.msra.mxu0 0.0
    %168 = vmatpush.msra.mxu0 0.0
    %169 = vmatpush.msra.mxu0 0.0
    %170 = vmatpush.msra.mxu0 0.0
    %171 = vmatpush.msra.mxu0 0.0
    %172 = vmatpush.msra.mxu0 0.0
    %173 = vmatpush.msra.mxu0 0.0
    %174 = vmatpush.msra.mxu0 0.0
    %175 = vmatpush.msra.mxu0 0.0
    %176 = vmatpush.msra.mxu0 %v139
    %177 = vmatmul.f32.gmra.mxu0 %v132
    %v178 = vpop.f32.mrf.mxu0
    %v179 = vadd.f32 %v128, %v178
    %180 = vdwg.mxu0
    %v182 = vperm.slane %v68, 0
    %v183 = vperm.slane %v68, 1
    %v186 = vadd.f32 %v159, %v182
    %v187 = vadd.f32 %v179, %v183
    %v188 = vtanh.pop %v186
    %v189 = vtanh.pop %v187
    %v191 = vperm.slane %v72, 0
    %v192 = vperm.slane %v72, 1
    %v195 = vmul.f32 %v188, %v191
    %v196 = vmul.f32 %v189, %v192
    %v198 = vperm.slane %v75, 0
    %v199 = vperm.slane %v75, 1
    %v202 = vadd.f32 %v195, %v198
    %v203 = vadd.f32 %v196, %v199
    %v204 = vmul.f32 %v202, 0.0
    %v205 = vmul.f32 %v202, %v203
    %207 = vrot.lane.b32.xlu0 %v205, 64
    %v208 = vpop.permute.xlu0 %207
    %v210 = vadd.f32 %v204, %v208
    %v211 = vtanh.pop %v210
    %v212 = vmul.f32 %v203, %v211
    %214 = vrot.lane.b32.xlu0 %v212, 64
    %v215 = vpop.permute.xlu0 %214
    %vm216 = vcmask 523264
    %v217 = vsel %vm216, %v215, 0
    %219 = vmatpush.msra.mxu0 0.0
    %220 = vmatpush.msra.mxu0 0.0
    %221 = vmatpush.msra.mxu0 0.0
    %222 = vmatpush.msra.mxu0 0.0
    %223 = vmatpush.msra.mxu0 0.0
    %224 = vmatpush.msra.mxu0 0.0
    %225 = vmatpush.msra.mxu0 0.0
    %226 = vmatpush.msra.mxu0 0.0
    %227 = vmatpush.msra.mxu0 %v56
    %228 = vmatpush.msra.mxu0 %v53
    %229 = vmatpush.msra.mxu0 %v50
    %230 = vmatpush.msra.mxu0 %v47
    %231 = vmatpush.msra.mxu0 %v44
    %232 = vmatpush.msra.mxu0 %v41
    %233 = vmatpush.msra.mxu0 %v38
    %234 = vmatpush.msra.mxu0 %v35
    %235 = vmatmul.f32.gmra.mxu0 %v217
    %v236 = vpop.f32.mrf.mxu0
    %v237 = vadd.f32 0.0, %v236
    %238 = vdwg.mxu0
    %239 = vmatpush.msra.mxu0 0.0
    %240 = vmatpush.msra.mxu0 0.0
    %241 = vmatpush.msra.mxu0 0.0
    %242 = vmatpush.msra.mxu0 0.0
    %243 = vmatpush.msra.mxu0 0.0
    %244 = vmatpush.msra.mxu0 0.0
    %245 = vmatpush.msra.mxu0 0.0
    %246 = vmatpush.msra.mxu0 0.0
    %247 = vmatpush.msra.mxu0 %v57
    %248 = vmatpush.msra.mxu0 %v54
    %249 = vmatpush.msra.mxu0 %v51
    %250 = vmatpush.msra.mxu0 %v48
    %251 = vmatpush.msra.mxu0 %v45
    %252 = vmatpush.msra.mxu0 %v42
    %253 = vmatpush.msra.mxu0 %v39
    %254 = vmatpush.msra.mxu0 %v36
    %255 = vmatmul.f32.gmra.mxu0 %v217
    %v256 = vpop.f32.mrf.mxu0
    %v257 = vadd.f32 0.0, %v256
    %258 = vdwg.mxu0
    %259 = vmatpush.msra.mxu0 0.0
    %260 = vmatpush.msra.mxu0 0.0
    %261 = vmatpush.msra.mxu0 0.0
    %262 = vmatpush.msra.mxu0 0.0
    %263 = vmatpush.msra.mxu0 0.0
    %264 = vmatpush.msra.mxu0 0.0
    %265 = vmatpush.msra.mxu0 0.0
    %266 = vmatpush.msra.mxu0 0.0
    %267 = vmatpush.msra.mxu0 %v58
    %268 = vmatpush.msra.mxu0 %v55
    %269 = vmatpush.msra.mxu0 %v52
    %270 = vmatpush.msra.mxu0 %v49
    %271 = vmatpush.msra.mxu0 %v46
    %272 = vmatpush.msra.mxu0 %v43
    %273 = vmatpush.msra.mxu0 %v40
    %274 = vmatpush.msra.mxu0 %v37
    %275 = vmatmul.f32.gmra.mxu0 %v217
    %v276 = vpop.f32.mrf.mxu0
    %v277 = vadd.f32 0.0, %v276
    %278 = vdwg.mxu0
    %v281 = vrot.slane %v237, 7
    %v282 = vrot.slane %v257, 7
    %v285 = vadd.f32 %v186, %v281
    %v286 = vadd.f32 %v187, %v282
    %v287 = vtanh.pop %v285
    %v288 = vtanh.pop %v286
    %v289 = vmul.f32 %v287, %v191
    %v290 = vmul.f32 %v288, %v192
    %v291 = vadd.f32 %v289, %v198
    %v292 = vadd.f32 %v290, %v199
    %v294 = vrot.slane %v210, 7
    %v296 = vmul.f32 %v291, %v294
    %v297 = vmul.f32 %v291, %v292
    %299 = vrot.lane.b32.xlu0 %v297, 64
    %v300 = vpop.permute.xlu0 %299
    %v302 = vadd.f32 %v296, %v300
    %v303 = vtanh.pop %v302
    %v304 = vmul.f32 %v292, %v303
    %v305 = vadd.f32 %v277, %v69
    %v306 = vtanh.pop %v305
    %v307 = vmul.f32 %v306, %v73
    %v308 = vadd.f32 %v307, %v76
    %v309 = vmul.f32 %v308, 0.0
    %311 = vrot.lane.b32.xlu0 %v308, 64
    %v312 = vpop.permute.xlu0 %311
    %v314 = vmul.f32 %v308, %v312
    %316 = vrot.lane.b32.xlu0 %v314, 32
    %v317 = vpop.permute.xlu0 %316
    %v319 = vadd.f32 %v309, %v317
    %v320 = vtanh.pop %v319
    %322 = vrot.lane.b32.xlu0 %v320, 64
    %v323 = vpop.permute.xlu0 %322
    %v325 = vmul.f32 %v308, %v323
    %v327 = vrot.slane %v304, 1
    %328 = vrot.lane.b32.xlu0 %v327, 64
    %v329 = vpop.permute.xlu0 %328
    %v330 = vsel %vm216, %v329, 0
    %332 = vmatpush.msra.mxu0 0.0
    %333 = vmatpush.msra.mxu0 0.0
    %334 = vmatpush.msra.mxu0 0.0
    %335 = vmatpush.msra.mxu0 0.0
    %336 = vmatpush.msra.mxu0 0.0
    %337 = vmatpush.msra.mxu0 0.0
    %338 = vmatpush.msra.mxu0 0.0
    %339 = vmatpush.msra.mxu0 0.0
    %340 = vmatpush.msra.mxu0 %v56
    %341 = vmatpush.msra.mxu0 %v53
    %342 = vmatpush.msra.mxu0 %v50
    %343 = vmatpush.msra.mxu0 %v47
    %344 = vmatpush.msra.mxu0 %v44
    %345 = vmatpush.msra.mxu0 %v41
    %346 = vmatpush.msra.mxu0 %v38
    %347 = vmatpush.msra.mxu0 %v35
    %348 = vmatmul.f32.gmra.mxu0 %v330
    %v349 = vpop.f32.mrf.mxu0
    %v350 = vadd.f32 0.0, %v349
    %351 = vdwg.mxu0
    %352 = vmatpush.msra.mxu0 0.0
    %353 = vmatpush.msra.mxu0 0.0
    %354 = vmatpush.msra.mxu0 0.0
    %355 = vmatpush.msra.mxu0 0.0
    %356 = vmatpush.msra.mxu0 0.0
    %357 = vmatpush.msra.mxu0 0.0
    %358 = vmatpush.msra.mxu0 0.0
    %359 = vmatpush.msra.mxu0 0.0
    %360 = vmatpush.msra.mxu0 %v57
    %361 = vmatpush.msra.mxu0 %v54
    %362 = vmatpush.msra.mxu0 %v51
    %363 = vmatpush.msra.mxu0 %v48
    %364 = vmatpush.msra.mxu0 %v45
    %365 = vmatpush.msra.mxu0 %v42
    %366 = vmatpush.msra.mxu0 %v39
    %367 = vmatpush.msra.mxu0 %v36
    %368 = vmatmul.f32.gmra.mxu0 %v330
    %v369 = vpop.f32.mrf.mxu0
    %v370 = vadd.f32 0.0, %v369
    %371 = vdwg.mxu0
    %372 = vmatpush.msra.mxu0 0.0
    %373 = vmatpush.msra.mxu0 0.0
    %374 = vmatpush.msra.mxu0 0.0
    %375 = vmatpush.msra.mxu0 0.0
    %376 = vmatpush.msra.mxu0 0.0
    %377 = vmatpush.msra.mxu0 0.0
    %378 = vmatpush.msra.mxu0 0.0
    %379 = vmatpush.msra.mxu0 0.0
    %380 = vmatpush.msra.mxu0 %v58
    %381 = vmatpush.msra.mxu0 %v55
    %382 = vmatpush.msra.mxu0 %v52
    %383 = vmatpush.msra.mxu0 %v49
    %384 = vmatpush.msra.mxu0 %v46
    %385 = vmatpush.msra.mxu0 %v43
    %386 = vmatpush.msra.mxu0 %v40
    %387 = vmatpush.msra.mxu0 %v37
    %388 = vmatmul.f32.gmra.mxu0 %v330
    %v389 = vpop.f32.mrf.mxu0
    %v390 = vadd.f32 0.0, %v389
    %391 = vdwg.mxu0
    %393 = vrot.lane.b32.xlu0 %v325, 32
    %v394 = vpop.permute.xlu0 %393
    %vm395 = vcmask 261120
    %v396 = vsel %vm395, %v394, 0
    %398 = vmatpush.msra.mxu0 0.0
    %399 = vmatpush.msra.mxu0 0.0
    %400 = vmatpush.msra.mxu0 0.0
    %401 = vmatpush.msra.mxu0 0.0
    %402 = vmatpush.msra.mxu0 0.0
    %403 = vmatpush.msra.mxu0 0.0
    %404 = vmatpush.msra.mxu0 0.0
    %405 = vmatpush.msra.mxu0 0.0
    %406 = vmatpush.msra.mxu0 0.0
    %407 = vmatpush.msra.mxu0 0.0
    %408 = vmatpush.msra.mxu0 0.0
    %409 = vmatpush.msra.mxu0 0.0
    %410 = vmatpush.msra.mxu0 %v62
    %411 = vmatpush.msra.mxu0 %v61
    %412 = vmatpush.msra.mxu0 %v60
    %413 = vmatpush.msra.mxu0 %v59
    %414 = vmatmul.f32.gmra.mxu0 %v396
    %v415 = vpop.f32.mrf.mxu0
    %v416 = vadd.f32 0.0, %v415
    %417 = vdwg.mxu0
    %v420 = vrot.slane %v350, 6
    %v421 = vrot.slane %v370, 6
    %v424 = vadd.f32 %v186, %v420
    %v425 = vadd.f32 %v187, %v421
    %v426 = vtanh.pop %v424
    %v427 = vtanh.pop %v425
    %v428 = vmul.f32 %v426, %v191
    %v429 = vmul.f32 %v427, %v192
    %v430 = vadd.f32 %v428, %v198
    %v431 = vadd.f32 %v429, %v199
    %v433 = vrot.slane %v302, 7
    %v435 = vmul.f32 %v430, %v433
    %v436 = vmul.f32 %v430, %v431
    %438 = vrot.lane.b32.xlu0 %v436, 64
    %v439 = vpop.permute.xlu0 %438
    %v441 = vadd.f32 %v435, %v439
    %v442 = vtanh.pop %v441
    %v443 = vmul.f32 %v431, %v442
    %v444 = vadd.f32 %v390, %v416
    %v445 = vadd.f32 %v444, %v69
    %v446 = vtanh.pop %v445
    %v447 = vmul.f32 %v446, %v73
    %v448 = vadd.f32 %v447, %v76
    %v449 = vmul.f32 %v448, %v319
    %451 = vrot.lane.b32.xlu0 %v448, 64
    %v452 = vpop.permute.xlu0 %451
    %v454 = vmul.f32 %v448, %v452
    %456 = vrot.lane.b32.xlu0 %v454, 32
    %v457 = vpop.permute.xlu0 %456
    %v459 = vadd.f32 %v449, %v457
    %v460 = vtanh.pop %v459
    %462 = vrot.lane.b32.xlu0 %v460, 64
    %v463 = vpop.permute.xlu0 %462
    %v465 = vmul.f32 %v448, %v463
    %v467 = vrot.slane %v443, 2
    %468 = vrot.lane.b32.xlu0 %v467, 64
    %v469 = vpop.permute.xlu0 %468
    %v470 = vsel %vm216, %v469, 0
    %472 = vmatpush.msra.mxu0 0.0
    %473 = vmatpush.msra.mxu0 0.0
    %474 = vmatpush.msra.mxu0 0.0
    %475 = vmatpush.msra.mxu0 0.0
    %476 = vmatpush.msra.mxu0 0.0
    %477 = vmatpush.msra.mxu0 0.0
    %478 = vmatpush.msra.mxu0 0.0
    %479 = vmatpush.msra.mxu0 0.0
    %480 = vmatpush.msra.mxu0 %v56
    %481 = vmatpush.msra.mxu0 %v53
    %482 = vmatpush.msra.mxu0 %v50
    %483 = vmatpush.msra.mxu0 %v47
    %484 = vmatpush.msra.mxu0 %v44
    %485 = vmatpush.msra.mxu0 %v41
    %486 = vmatpush.msra.mxu0 %v38
    %487 = vmatpush.msra.mxu0 %v35
    %488 = vmatmul.f32.gmra.mxu0 %v470
    %v489 = vpop.f32.mrf.mxu0
    %v490 = vadd.f32 0.0, %v489
    %491 = vdwg.mxu0
    %492 = vmatpush.msra.mxu0 0.0
    %493 = vmatpush.msra.mxu0 0.0
    %494 = vmatpush.msra.mxu0 0.0
    %495 = vmatpush.msra.mxu0 0.0
    %496 = vmatpush.msra.mxu0 0.0
    %497 = vmatpush.msra.mxu0 0.0
    %498 = vmatpush.msra.mxu0 0.0
    %499 = vmatpush.msra.mxu0 0.0
    %500 = vmatpush.msra.mxu0 %v57
    %501 = vmatpush.msra.mxu0 %v54
    %502 = vmatpush.msra.mxu0 %v51
    %503 = vmatpush.msra.mxu0 %v48
    %504 = vmatpush.msra.mxu0 %v45
    %505 = vmatpush.msra.mxu0 %v42
    %506 = vmatpush.msra.mxu0 %v39
    %507 = vmatpush.msra.mxu0 %v36
    %508 = vmatmul.f32.gmra.mxu0 %v470
    %v509 = vpop.f32.mrf.mxu0
    %v510 = vadd.f32 0.0, %v509
    %511 = vdwg.mxu0
    %512 = vmatpush.msra.mxu0 0.0
    %513 = vmatpush.msra.mxu0 0.0
    %514 = vmatpush.msra.mxu0 0.0
    %515 = vmatpush.msra.mxu0 0.0
    %516 = vmatpush.msra.mxu0 0.0
    %517 = vmatpush.msra.mxu0 0.0
    %518 = vmatpush.msra.mxu0 0.0
    %519 = vmatpush.msra.mxu0 0.0
    %520 = vmatpush.msra.mxu0 %v58
    %521 = vmatpush.msra.mxu0 %v55
    %522 = vmatpush.msra.mxu0 %v52
    %523 = vmatpush.msra.mxu0 %v49
    %524 = vmatpush.msra.mxu0 %v46
    %525 = vmatpush.msra.mxu0 %v43
    %526 = vmatpush.msra.mxu0 %v40
    %527 = vmatpush.msra.mxu0 %v37
    %528 = vmatmul.f32.gmra.mxu0 %v470
    %v529 = vpop.f32.mrf.mxu0
    %v530 = vadd.f32 0.0, %v529
    %531 = vdwg.mxu0
    %533 = vrot.lane.b32.xlu0 %v465, 32
    %v534 = vpop.permute.xlu0 %533
    %v535 = vsel %vm395, %v534, 0
    %537 = vmatpush.msra.mxu0 0.0
    %538 = vmatpush.msra.mxu0 0.0
    %539 = vmatpush.msra.mxu0 0.0
    %540 = vmatpush.msra.mxu0 0.0
    %541 = vmatpush.msra.mxu0 0.0
    %542 = vmatpush.msra.mxu0 0.0
    %543 = vmatpush.msra.mxu0 0.0
    %544 = vmatpush.msra.mxu0 0.0
    %545 = vmatpush.msra.mxu0 0.0
    %546 = vmatpush.msra.mxu0 0.0
    %547 = vmatpush.msra.mxu0 0.0
    %548 = vmatpush.msra.mxu0 0.0
    %549 = vmatpush.msra.mxu0 %v62
    %550 = vmatpush.msra.mxu0 %v61
    %551 = vmatpush.msra.mxu0 %v60
    %552 = vmatpush.msra.mxu0 %v59
    %553 = vmatmul.f32.gmra.mxu0 %v535
    %v554 = vpop.f32.mrf.mxu0
    %v555 = vadd.f32 0.0, %v554
    %556 = vdwg.mxu0
    %v559 = vrot.slane %v490, 5
    %v560 = vrot.slane %v510, 5
    %v563 = vadd.f32 %v186, %v559
    %v564 = vadd.f32 %v187, %v560
    %v565 = vtanh.pop %v563
    %v566 = vtanh.pop %v564
    %v567 = vmul.f32 %v565, %v191
    %v568 = vmul.f32 %v566, %v192
    %v569 = vadd.f32 %v567, %v198
    %v570 = vadd.f32 %v568, %v199
    %v572 = vrot.slane %v441, 7
    %v574 = vmul.f32 %v569, %v572
    %v575 = vmul.f32 %v569, %v570
    %577 = vrot.lane.b32.xlu0 %v575, 64
    %v578 = vpop.permute.xlu0 %577
    %v580 = vadd.f32 %v574, %v578
    %v581 = vtanh.pop %v580
    %v582 = vmul.f32 %v570, %v581
    %v583 = vadd.f32 %v530, %v555
    %v584 = vadd.f32 %v583, %v69
    %v585 = vtanh.pop %v584
    %v586 = vmul.f32 %v585, %v73
    %v587 = vadd.f32 %v586, %v76
    %v588 = vmul.f32 %v587, %v459
    %590 = vrot.lane.b32.xlu0 %v587, 64
    %v591 = vpop.permute.xlu0 %590
    %v593 = vmul.f32 %v587, %v591
    %595 = vrot.lane.b32.xlu0 %v593, 32
    %v596 = vpop.permute.xlu0 %595
    %v598 = vadd.f32 %v588, %v596
    %v599 = vtanh.pop %v598
    %601 = vrot.lane.b32.xlu0 %v599, 64
    %v602 = vpop.permute.xlu0 %601
    %v604 = vmul.f32 %v587, %v602
    %v606 = vrot.slane %v582, 3
    %607 = vrot.lane.b32.xlu0 %v606, 64
    %v608 = vpop.permute.xlu0 %607
    %v609 = vsel %vm216, %v608, 0
    %611 = vmatpush.msra.mxu0 0.0
    %612 = vmatpush.msra.mxu0 0.0
    %613 = vmatpush.msra.mxu0 0.0
    %614 = vmatpush.msra.mxu0 0.0
    %615 = vmatpush.msra.mxu0 0.0
    %616 = vmatpush.msra.mxu0 0.0
    %617 = vmatpush.msra.mxu0 0.0
    %618 = vmatpush.msra.mxu0 0.0
    %619 = vmatpush.msra.mxu0 %v56
    %620 = vmatpush.msra.mxu0 %v53
    %621 = vmatpush.msra.mxu0 %v50
    %622 = vmatpush.msra.mxu0 %v47
    %623 = vmatpush.msra.mxu0 %v44
    %624 = vmatpush.msra.mxu0 %v41
    %625 = vmatpush.msra.mxu0 %v38
    %626 = vmatpush.msra.mxu0 %v35
    %627 = vmatmul.f32.gmra.mxu0 %v609
    %v628 = vpop.f32.mrf.mxu0
    %v629 = vadd.f32 0.0, %v628
    %630 = vdwg.mxu0
    %631 = vmatpush.msra.mxu0 0.0
    %632 = vmatpush.msra.mxu0 0.0
    %633 = vmatpush.msra.mxu0 0.0
    %634 = vmatpush.msra.mxu0 0.0
    %635 = vmatpush.msra.mxu0 0.0
    %636 = vmatpush.msra.mxu0 0.0
    %637 = vmatpush.msra.mxu0 0.0
    %638 = vmatpush.msra.mxu0 0.0
    %639 = vmatpush.msra.mxu0 %v57
    %640 = vmatpush.msra.mxu0 %v54
    %641 = vmatpush.msra.mxu0 %v51
    %642 = vmatpush.msra.mxu0 %v48
    %643 = vmatpush.msra.mxu0 %v45
    %644 = vmatpush.msra.mxu0 %v42
    %645 = vmatpush.msra.mxu0 %v39
    %646 = vmatpush.msra.mxu0 %v36
    %647 = vmatmul.f32.gmra.mxu0 %v609
    %v648 = vpop.f32.mrf.mxu0
    %v649 = vadd.f32 0.0, %v648
    %650 = vdwg.mxu0
    %651 = vmatpush.msra.mxu0 0.0
    %652 = vmatpush.msra.mxu0 0.0
    %653 = vmatpush.msra.mxu0 0.0
    %654 = vmatpush.msra.mxu0 0.0
    %655 = vmatpush.msra.mxu0 0.0
    %656 = vmatpush.msra.mxu0 0.0
    %657 = vmatpush.msra.mxu0 0.0
    %658 = vmatpush.msra.mxu0 0.0
    %659 = vmatpush.msra.mxu0 %v58
    %660 = vmatpush.msra.mxu0 %v55
    %661 = vmatpush.msra.mxu0 %v52
    %662 = vmatpush.msra.mxu0 %v49
    %663 = vmatpush.msra.mxu0 %v46
    %664 = vmatpush.msra.mxu0 %v43
    %665 = vmatpush.msra.mxu0 %v40
    %666 = vmatpush.msra.mxu0 %v37
    %667 = vmatmul.f32.gmra.mxu0 %v609
    %v668 = vpop.f32.mrf.mxu0
    %v669 = vadd.f32 0.0, %v668
    %670 = vdwg.mxu0
    %672 = vrot.lane.b32.xlu0 %v604, 32
    %v673 = vpop.permute.xlu0 %672
    %v674 = vsel %vm395, %v673, 0
    %676 = vmatpush.msra.mxu0 0.0
    %677 = vmatpush.msra.mxu0 0.0
    %678 = vmatpush.msra.mxu0 0.0
    %679 = vmatpush.msra.mxu0 0.0
    %680 = vmatpush.msra.mxu0 0.0
    %681 = vmatpush.msra.mxu0 0.0
    %682 = vmatpush.msra.mxu0 0.0
    %683 = vmatpush.msra.mxu0 0.0
    %684 = vmatpush.msra.mxu0 0.0
    %685 = vmatpush.msra.mxu0 0.0
    %686 = vmatpush.msra.mxu0 0.0
    %687 = vmatpush.msra.mxu0 0.0
    %688 = vmatpush.msra.mxu0 %v62
    %689 = vmatpush.msra.mxu0 %v61
    %690 = vmatpush.msra.mxu0 %v60
    %691 = vmatpush.msra.mxu0 %v59
    %692 = vmatmul.f32.gmra.mxu0 %v674
    %v693 = vpop.f32.mrf.mxu0
    %v694 = vadd.f32 0.0, %v693
    %695 = vdwg.mxu0
    %v698 = vrot.slane %v629, 4
    %v699 = vrot.slane %v649, 4
    %v702 = vadd.f32 %v186, %v698
    %v703 = vadd.f32 %v187, %v699
    %v704 = vtanh.pop %v702
    %v705 = vtanh.pop %v703
    %v706 = vmul.f32 %v704, %v191
    %v707 = vmul.f32 %v705, %v192
    %v708 = vadd.f32 %v706, %v198
    %v709 = vadd.f32 %v707, %v199
    %v711 = vrot.slane %v580, 7
    %v713 = vmul.f32 %v708, %v711
    %v714 = vmul.f32 %v708, %v709
    %716 = vrot.lane.b32.xlu0 %v714, 64
    %v717 = vpop.permute.xlu0 %716
    %v719 = vadd.f32 %v713, %v717
    %v720 = vtanh.pop %v719
    %v721 = vmul.f32 %v709, %v720
    %v722 = vadd.f32 %v669, %v694
    %v723 = vadd.f32 %v722, %v69
    %v724 = vtanh.pop %v723
    %v725 = vmul.f32 %v724, %v73
    %v726 = vadd.f32 %v725, %v76
    %v727 = vmul.f32 %v726, %v598
    %729 = vrot.lane.b32.xlu0 %v726, 64
    %v730 = vpop.permute.xlu0 %729
    %v732 = vmul.f32 %v726, %v730
    %734 = vrot.lane.b32.xlu0 %v732, 32
    %v735 = vpop.permute.xlu0 %734
    %v737 = vadd.f32 %v727, %v735
    %v738 = vtanh.pop %v737
    %740 = vrot.lane.b32.xlu0 %v738, 64
    %v741 = vpop.permute.xlu0 %740
    %v743 = vmul.f32 %v726, %v741
    %v745 = vrot.slane %v721, 4
    %746 = vrot.lane.b32.xlu0 %v745, 64
    %v747 = vpop.permute.xlu0 %746
    %v748 = vsel %vm216, %v747, 0
    %750 = vmatpush.msra.mxu0 0.0
    %751 = vmatpush.msra.mxu0 0.0
    %752 = vmatpush.msra.mxu0 0.0
    %753 = vmatpush.msra.mxu0 0.0
    %754 = vmatpush.msra.mxu0 0.0
    %755 = vmatpush.msra.mxu0 0.0
    %756 = vmatpush.msra.mxu0 0.0
    %757 = vmatpush.msra.mxu0 0.0
    %758 = vmatpush.msra.mxu0 %v56
    %759 = vmatpush.msra.mxu0 %v53
    %760 = vmatpush.msra.mxu0 %v50
    %761 = vmatpush.msra.mxu0 %v47
    %762 = vmatpush.msra.mxu0 %v44
    %763 = vmatpush.msra.mxu0 %v41
    %764 = vmatpush.msra.mxu0 %v38
    %765 = vmatpush.msra.mxu0 %v35
    %766 = vmatmul.f32.gmra.mxu0 %v748
    %v767 = vpop.f32.mrf.mxu0
    %v768 = vadd.f32 0.0, %v767
    %769 = vdwg.mxu0
    %770 = vmatpush.msra.mxu0 0.0
    %771 = vmatpush.msra.mxu0 0.0
    %772 = vmatpush.msra.mxu0 0.0
    %773 = vmatpush.msra.mxu0 0.0
    %774 = vmatpush.msra.mxu0 0.0
    %775 = vmatpush.msra.mxu0 0.0
    %776 = vmatpush.msra.mxu0 0.0
    %777 = vmatpush.msra.mxu0 0.0
    %778 = vmatpush.msra.mxu0 %v57
    %779 = vmatpush.msra.mxu0 %v54
    %780 = vmatpush.msra.mxu0 %v51
    %781 = vmatpush.msra.mxu0 %v48
    %782 = vmatpush.msra.mxu0 %v45
    %783 = vmatpush.msra.mxu0 %v42
    %784 = vmatpush.msra.mxu0 %v39
    %785 = vmatpush.msra.mxu0 %v36
    %786 = vmatmul.f32.gmra.mxu0 %v748
    %v787 = vpop.f32.mrf.mxu0
    %v788 = vadd.f32 0.0, %v787
    %789 = vdwg.mxu0
    %790 = vmatpush.msra.mxu0 0.0
    %791 = vmatpush.msra.mxu0 0.0
    %792 = vmatpush.msra.mxu0 0.0
    %793 = vmatpush.msra.mxu0 0.0
    %794 = vmatpush.msra.mxu0 0.0
    %795 = vmatpush.msra.mxu0 0.0
    %796 = vmatpush.msra.mxu0 0.0
    %797 = vmatpush.msra.mxu0 0.0
    %798 = vmatpush.msra.mxu0 %v58
    %799 = vmatpush.msra.mxu0 %v55
    %800 = vmatpush.msra.mxu0 %v52
    %801 = vmatpush.msra.mxu0 %v49
    %802 = vmatpush.msra.mxu0 %v46
    %803 = vmatpush.msra.mxu0 %v43
    %804 = vmatpush.msra.mxu0 %v40
    %805 = vmatpush.msra.mxu0 %v37
    %806 = vmatmul.f32.gmra.mxu0 %v748
    %v807 = vpop.f32.mrf.mxu0
    %v808 = vadd.f32 0.0, %v807
    %809 = vdwg.mxu0
    %811 = vrot.lane.b32.xlu0 %v743, 32
    %v812 = vpop.permute.xlu0 %811
    %v813 = vsel %vm395, %v812, 0
    %815 = vmatpush.msra.mxu0 0.0
    %816 = vmatpush.msra.mxu0 0.0
    %817 = vmatpush.msra.mxu0 0.0
    %818 = vmatpush.msra.mxu0 0.0
    %819 = vmatpush.msra.mxu0 0.0
    %820 = vmatpush.msra.mxu0 0.0
    %821 = vmatpush.msra.mxu0 0.0
    %822 = vmatpush.msra.mxu0 0.0
    %823 = vmatpush.msra.mxu0 0.0
    %824 = vmatpush.msra.mxu0 0.0
    %825 = vmatpush.msra.mxu0 0.0
    %826 = vmatpush.msra.mxu0 0.0
    %827 = vmatpush.msra.mxu0 %v62
    %828 = vmatpush.msra.mxu0 %v61
    %829 = vmatpush.msra.mxu0 %v60
    %830 = vmatpush.msra.mxu0 %v59
    %831 = vmatmul.f32.gmra.mxu0 %v813
    %v832 = vpop.f32.mrf.mxu0
    %v833 = vadd.f32 0.0, %v832
    %834 = vdwg.mxu0
    %v837 = vrot.slane %v768, 3
    %v838 = vrot.slane %v788, 3
    %v841 = vadd.f32 %v186, %v837
    %v842 = vadd.f32 %v187, %v838
    %v843 = vtanh.pop %v841
    %v844 = vtanh.pop %v842
    %v845 = vmul.f32 %v843, %v191
    %v846 = vmul.f32 %v844, %v192
    %v847 = vadd.f32 %v845, %v198
    %v848 = vadd.f32 %v846, %v199
    %v850 = vrot.slane %v719, 7
    %v852 = vmul.f32 %v847, %v850
    %v853 = vmul.f32 %v847, %v848
    %855 = vrot.lane.b32.xlu0 %v853, 64
    %v856 = vpop.permute.xlu0 %855
    %v858 = vadd.f32 %v852, %v856
    %v859 = vtanh.pop %v858
    %v860 = vmul.f32 %v848, %v859
    %v861 = vadd.f32 %v808, %v833
    %v862 = vadd.f32 %v861, %v69
    %v863 = vtanh.pop %v862
    %v864 = vmul.f32 %v863, %v73
    %v865 = vadd.f32 %v864, %v76
    %v866 = vmul.f32 %v865, %v737
    %868 = vrot.lane.b32.xlu0 %v865, 64
    %v869 = vpop.permute.xlu0 %868
    %v871 = vmul.f32 %v865, %v869
    %873 = vrot.lane.b32.xlu0 %v871, 32
    %v874 = vpop.permute.xlu0 %873
    %v876 = vadd.f32 %v866, %v874
    %v877 = vtanh.pop %v876
    %879 = vrot.lane.b32.xlu0 %v877, 64
    %v880 = vpop.permute.xlu0 %879
    %v882 = vmul.f32 %v865, %v880
    %v884 = vrot.slane %v860, 5
    %885 = vrot.lane.b32.xlu0 %v884, 64
    %v886 = vpop.permute.xlu0 %885
    %v887 = vsel %vm216, %v886, 0
    %889 = vmatpush.msra.mxu0 0.0
    %890 = vmatpush.msra.mxu0 0.0
    %891 = vmatpush.msra.mxu0 0.0
    %892 = vmatpush.msra.mxu0 0.0
    %893 = vmatpush.msra.mxu0 0.0
    %894 = vmatpush.msra.mxu0 0.0
    %895 = vmatpush.msra.mxu0 0.0
    %896 = vmatpush.msra.mxu0 0.0
    %897 = vmatpush.msra.mxu0 %v56
    %898 = vmatpush.msra.mxu0 %v53
    %899 = vmatpush.msra.mxu0 %v50
    %900 = vmatpush.msra.mxu0 %v47
    %901 = vmatpush.msra.mxu0 %v44
    %902 = vmatpush.msra.mxu0 %v41
    %903 = vmatpush.msra.mxu0 %v38
    %904 = vmatpush.msra.mxu0 %v35
    %905 = vmatmul.f32.gmra.mxu0 %v887
    %v906 = vpop.f32.mrf.mxu0
    %v907 = vadd.f32 0.0, %v906
    %908 = vdwg.mxu0
    %909 = vmatpush.msra.mxu0 0.0
    %910 = vmatpush.msra.mxu0 0.0
    %911 = vmatpush.msra.mxu0 0.0
    %912 = vmatpush.msra.mxu0 0.0
    %913 = vmatpush.msra.mxu0 0.0
    %914 = vmatpush.msra.mxu0 0.0
    %915 = vmatpush.msra.mxu0 0.0
    %916 = vmatpush.msra.mxu0 0.0
    %917 = vmatpush.msra.mxu0 %v57
    %918 = vmatpush.msra.mxu0 %v54
    %919 = vmatpush.msra.mxu0 %v51
    %920 = vmatpush.msra.mxu0 %v48
    %921 = vmatpush.msra.mxu0 %v45
    %922 = vmatpush.msra.mxu0 %v42
    %923 = vmatpush.msra.mxu0 %v39
    %924 = vmatpush.msra.mxu0 %v36
    %925 = vmatmul.f32.gmra.mxu0 %v887
    %v926 = vpop.f32.mrf.mxu0
    %v927 = vadd.f32 0.0, %v926
    %928 = vdwg.mxu0
    %929 = vmatpush.msra.mxu0 0.0
    %930 = vmatpush.msra.mxu0 0.0
    %931 = vmatpush.msra.mxu0 0.0
    %932 = vmatpush.msra.mxu0 0.0
    %933 = vmatpush.msra.mxu0 0.0
    %934 = vmatpush.msra.mxu0 0.0
    %935 = vmatpush.msra.mxu0 0.0
    %936 = vmatpush.msra.mxu0 0.0
    %937 = vmatpush.msra.mxu0 %v58
    %938 = vmatpush.msra.mxu0 %v55
    %939 = vmatpush.msra.mxu0 %v52
    %940 = vmatpush.msra.mxu0 %v49
    %941 = vmatpush.msra.mxu0 %v46
    %942 = vmatpush.msra.mxu0 %v43
    %943 = vmatpush.msra.mxu0 %v40
    %944 = vmatpush.msra.mxu0 %v37
    %945 = vmatmul.f32.gmra.mxu0 %v887
    %v946 = vpop.f32.mrf.mxu0
    %v947 = vadd.f32 0.0, %v946
    %948 = vdwg.mxu0
    %950 = vrot.lane.b32.xlu0 %v882, 32
    %v951 = vpop.permute.xlu0 %950
    %v952 = vsel %vm395, %v951, 0
    %954 = vmatpush.msra.mxu0 0.0
    %955 = vmatpush.msra.mxu0 0.0
    %956 = vmatpush.msra.mxu0 0.0
    %957 = vmatpush.msra.mxu0 0.0
    %958 = vmatpush.msra.mxu0 0.0
    %959 = vmatpush.msra.mxu0 0.0
    %960 = vmatpush.msra.mxu0 0.0
    %961 = vmatpush.msra.mxu0 0.0
    %962 = vmatpush.msra.mxu0 0.0
    %963 = vmatpush.msra.mxu0 0.0
    %964 = vmatpush.msra.mxu0 0.0
    %965 = vmatpush.msra.mxu0 0.0
    %966 = vmatpush.msra.mxu0 %v62
    %967 = vmatpush.msra.mxu0 %v61
    %968 = vmatpush.msra.mxu0 %v60
    %969 = vmatpush.msra.mxu0 %v59
    %970 = vmatmul.f32.gmra.mxu0 %v952
    %v971 = vpop.f32.mrf.mxu0
    %v972 = vadd.f32 0.0, %v971
    %973 = vdwg.mxu0
    %v976 = vrot.slane %v907, 2
    %v977 = vrot.slane %v927, 2
    %v980 = vadd.f32 %v186, %v976
    %v981 = vadd.f32 %v187, %v977
    %v982 = vtanh.pop %v980
    %v983 = vtanh.pop %v981
    %v984 = vmul.f32 %v982, %v191
    %v985 = vmul.f32 %v983, %v192
    %v986 = vadd.f32 %v984, %v198
    %v987 = vadd.f32 %v985, %v199
    %v989 = vrot.slane %v858, 7
    %v991 = vmul.f32 %v986, %v989
    %v992 = vmul.f32 %v986, %v987
    %994 = vrot.lane.b32.xlu0 %v992, 64
    %v995 = vpop.permute.xlu0 %994
    %v997 = vadd.f32 %v991, %v995
    %v998 = vtanh.pop %v997
    %v999 = vmul.f32 %v987, %v998
    %v1000 = vadd.f32 %v947, %v972
    %v1001 = vadd.f32 %v1000, %v69
    %v1002 = vtanh.pop %v1001
    %v1003 = vmul.f32 %v1002, %v73
    %v1004 = vadd.f32 %v1003, %v76
    %v1005 = vmul.f32 %v1004, %v876
    %1007 = vrot.lane.b32.xlu0 %v1004, 64
    %v1008 = vpop.permute.xlu0 %1007
    %v1010 = vmul.f32 %v1004, %v1008
    %1012 = vrot.lane.b32.xlu0 %v1010, 32
    %v1013 = vpop.permute.xlu0 %1012
    %v1015 = vadd.f32 %v1005, %v1013
    %v1016 = vtanh.pop %v1015
    %1018 = vrot.lane.b32.xlu0 %v1016, 64
    %v1019 = vpop.permute.xlu0 %1018
    %v1021 = vmul.f32 %v1004, %v1019
    %v1023 = vrot.slane %v999, 6
    %1024 = vrot.lane.b32.xlu0 %v1023, 64
    %v1025 = vpop.permute.xlu0 %1024
    %v1026 = vsel %vm216, %v1025, 0
    %1028 = vmatpush.msra.mxu0 0.0
    %1029 = vmatpush.msra.mxu0 0.0
    %1030 = vmatpush.msra.mxu0 0.0
    %1031 = vmatpush.msra.mxu0 0.0
    %1032 = vmatpush.msra.mxu0 0.0
    %1033 = vmatpush.msra.mxu0 0.0
    %1034 = vmatpush.msra.mxu0 0.0
    %1035 = vmatpush.msra.mxu0 0.0
    %1036 = vmatpush.msra.mxu0 %v56
    %1037 = vmatpush.msra.mxu0 %v53
    %1038 = vmatpush.msra.mxu0 %v50
    %1039 = vmatpush.msra.mxu0 %v47
    %1040 = vmatpush.msra.mxu0 %v44
    %1041 = vmatpush.msra.mxu0 %v41
    %1042 = vmatpush.msra.mxu0 %v38
    %1043 = vmatpush.msra.mxu0 %v35
    %1044 = vmatmul.f32.gmra.mxu0 %v1026
    %v1045 = vpop.f32.mrf.mxu0
    %v1046 = vadd.f32 0.0, %v1045
    %1047 = vdwg.mxu0
    %1048 = vmatpush.msra.mxu0 0.0
    %1049 = vmatpush.msra.mxu0 0.0
    %1050 = vmatpush.msra.mxu0 0.0
    %1051 = vmatpush.msra.mxu0 0.0
    %1052 = vmatpush.msra.mxu0 0.0
    %1053 = vmatpush.msra.mxu0 0.0
    %1054 = vmatpush.msra.mxu0 0.0
    %1055 = vmatpush.msra.mxu0 0.0
    %1056 = vmatpush.msra.mxu0 %v57
    %1057 = vmatpush.msra.mxu0 %v54
    %1058 = vmatpush.msra.mxu0 %v51
    %1059 = vmatpush.msra.mxu0 %v48
    %1060 = vmatpush.msra.mxu0 %v45
    %1061 = vmatpush.msra.mxu0 %v42
    %1062 = vmatpush.msra.mxu0 %v39
    %1063 = vmatpush.msra.mxu0 %v36
    %1064 = vmatmul.f32.gmra.mxu0 %v1026
    %v1065 = vpop.f32.mrf.mxu0
    %v1066 = vadd.f32 0.0, %v1065
    %1067 = vdwg.mxu0
    %1068 = vmatpush.msra.mxu0 0.0
    %1069 = vmatpush.msra.mxu0 0.0
    %1070 = vmatpush.msra.mxu0 0.0
    %1071 = vmatpush.msra.mxu0 0.0
    %1072 = vmatpush.msra.mxu0 0.0
    %1073 = vmatpush.msra.mxu0 0.0
    %1074 = vmatpush.msra.mxu0 0.0
    %1075 = vmatpush.msra.mxu0 0.0
    %1076 = vmatpush.msra.mxu0 %v58
    %1077 = vmatpush.msra.mxu0 %v55
    %1078 = vmatpush.msra.mxu0 %v52
    %1079 = vmatpush.msra.mxu0 %v49
    %1080 = vmatpush.msra.mxu0 %v46
    %1081 = vmatpush.msra.mxu0 %v43
    %1082 = vmatpush.msra.mxu0 %v40
    %1083 = vmatpush.msra.mxu0 %v37
    %1084 = vmatmul.f32.gmra.mxu0 %v1026
    %v1085 = vpop.f32.mrf.mxu0
    %v1086 = vadd.f32 0.0, %v1085
    %1087 = vdwg.mxu0
    %1089 = vrot.lane.b32.xlu0 %v1021, 32
    %v1090 = vpop.permute.xlu0 %1089
    %v1091 = vsel %vm395, %v1090, 0
    %1093 = vmatpush.msra.mxu0 0.0
    %1094 = vmatpush.msra.mxu0 0.0
    %1095 = vmatpush.msra.mxu0 0.0
    %1096 = vmatpush.msra.mxu0 0.0
    %1097 = vmatpush.msra.mxu0 0.0
    %1098 = vmatpush.msra.mxu0 0.0
    %1099 = vmatpush.msra.mxu0 0.0
    %1100 = vmatpush.msra.mxu0 0.0
    %1101 = vmatpush.msra.mxu0 0.0
    %1102 = vmatpush.msra.mxu0 0.0
    %1103 = vmatpush.msra.mxu0 0.0
    %1104 = vmatpush.msra.mxu0 0.0
    %1105 = vmatpush.msra.mxu0 %v62
    %1106 = vmatpush.msra.mxu0 %v61
    %1107 = vmatpush.msra.mxu0 %v60
    %1108 = vmatpush.msra.mxu0 %v59
    %1109 = vmatmul.f32.gmra.mxu0 %v1091
    %v1110 = vpop.f32.mrf.mxu0
    %v1111 = vadd.f32 0.0, %v1110
    %1112 = vdwg.mxu0
    %v1115 = vrot.slane %v1046, 1
    %v1116 = vrot.slane %v1066, 1
    %v1119 = vadd.f32 %v186, %v1115
    %v1120 = vadd.f32 %v187, %v1116
    %v1121 = vtanh.pop %v1119
    %v1122 = vtanh.pop %v1120
    %v1123 = vmul.f32 %v1121, %v191
    %v1124 = vmul.f32 %v1122, %v192
    %v1125 = vadd.f32 %v1123, %v198
    %v1126 = vadd.f32 %v1124, %v199
    %v1128 = vrot.slane %v997, 7
    %v1130 = vmul.f32 %v1125, %v1128
    %v1131 = vmul.f32 %v1125, %v1126
    %1133 = vrot.lane.b32.xlu0 %v1131, 64
    %v1134 = vpop.permute.xlu0 %1133
    %v1136 = vadd.f32 %v1130, %v1134
    %v1137 = vtanh.pop %v1136
    %v1138 = vmul.f32 %v1126, %v1137
    %v1139 = vadd.f32 %v1086, %v1111
    %v1140 = vadd.f32 %v1139, %v69
    %v1141 = vtanh.pop %v1140
    %v1142 = vmul.f32 %v1141, %v73
    %v1143 = vadd.f32 %v1142, %v76
    %v1144 = vmul.f32 %v1143, %v1015
    %1146 = vrot.lane.b32.xlu0 %v1143, 64
    %v1147 = vpop.permute.xlu0 %1146
    %v1149 = vmul.f32 %v1143, %v1147
    %1151 = vrot.lane.b32.xlu0 %v1149, 32
    %v1152 = vpop.permute.xlu0 %1151
    %v1154 = vadd.f32 %v1144, %v1152
    %v1155 = vtanh.pop %v1154
    %1157 = vrot.lane.b32.xlu0 %v1155, 64
    %v1158 = vpop.permute.xlu0 %1157
    %v1160 = vmul.f32 %v1143, %v1158
    %v1162 = vrot.slane %v1138, 7
    %1163 = vrot.lane.b32.xlu0 %v1162, 64
    %v1164 = vpop.permute.xlu0 %1163
    %v1165 = vsel %vm216, %v1164, 0
    %1167 = vmatpush.msra.mxu0 0.0
    %1168 = vmatpush.msra.mxu0 0.0
    %1169 = vmatpush.msra.mxu0 0.0
    %1170 = vmatpush.msra.mxu0 0.0
    %1171 = vmatpush.msra.mxu0 0.0
    %1172 = vmatpush.msra.mxu0 0.0
    %1173 = vmatpush.msra.mxu0 0.0
    %1174 = vmatpush.msra.mxu0 0.0
    %1175 = vmatpush.msra.mxu0 %v58
    %1176 = vmatpush.msra.mxu0 %v55
    %1177 = vmatpush.msra.mxu0 %v52
    %1178 = vmatpush.msra.mxu0 %v49
    %1179 = vmatpush.msra.mxu0 %v46
    %1180 = vmatpush.msra.mxu0 %v43
    %1181 = vmatpush.msra.mxu0 %v40
    %1182 = vmatpush.msra.mxu0 %v37
    %1183 = vmatmul.f32.gmra.mxu0 %v1165
    %v1184 = vpop.f32.mrf.mxu0
    %v1185 = vadd.f32 0.0, %v1184
    %1186 = vdwg.mxu0
    %1188 = vrot.lane.b32.xlu0 %v1160, 32
    %v1189 = vpop.permute.xlu0 %1188
    %v1190 = vsel %vm395, %v1189, 0
    %1192 = vmatpush.msra.mxu0 0.0
    %1193 = vmatpush.msra.mxu0 0.0
    %1194 = vmatpush.msra.mxu0 0.0
    %1195 = vmatpush.msra.mxu0 0.0
    %1196 = vmatpush.msra.mxu0 0.0
    %1197 = vmatpush.msra.mxu0 0.0
    %1198 = vmatpush.msra.mxu0 0.0
    %1199 = vmatpush.msra.mxu0 0.0
    %1200 = vmatpush.msra.mxu0 0.0
    %1201 = vmatpush.msra.mxu0 0.0
    %1202 = vmatpush.msra.mxu0 0.0
    %1203 = vmatpush.msra.mxu0 0.0
    %1204 = vmatpush.msra.mxu0 %v62
    %1205 = vmatpush.msra.mxu0 %v61
    %1206 = vmatpush.msra.mxu0 %v60
    %1207 = vmatpush.msra.mxu0 %v59
    %1208 = vmatmul.f32.gmra.mxu0 %v1190
    %v1209 = vpop.f32.mrf.mxu0
    %v1210 = vadd.f32 0.0, %v1209
    %1211 = vdwg.mxu0
    %v1212 = vadd.f32 %v1185, %v1210
    %v1213 = vadd.f32 %v1212, %v69
    %v1214 = vtanh.pop %v1213
    %v1215 = vmul.f32 %v1214, %v73
    %v1216 = vadd.f32 %v1215, %v76
    %v1217 = vmul.f32 %v1216, %v1154
    %1219 = vrot.lane.b32.xlu0 %v1216, 64
    %v1220 = vpop.permute.xlu0 %1219
    %v1222 = vmul.f32 %v1216, %v1220
    %1224 = vrot.lane.b32.xlu0 %v1222, 32
    %v1225 = vpop.permute.xlu0 %1224
    %v1227 = vadd.f32 %v1217, %v1225
    %v1228 = vtanh.pop %v1227
    %1230 = vrot.lane.b32.xlu0 %v1228, 64
    %v1231 = vpop.permute.xlu0 %1230
    %v1233 = vmul.f32 %v1216, %v1231
    %1235 = vrot.lane.b32.xlu0 %v1233, 32
    %v1236 = vpop.permute.xlu0 %1235
    %v1237 = vsel %vm395, %v1236, 0
    %1239 = vmatpush.msra.mxu0 0.0
    %1240 = vmatpush.msra.mxu0 0.0
    %1241 = vmatpush.msra.mxu0 0.0
    %1242 = vmatpush.msra.mxu0 0.0
    %1243 = vmatpush.msra.mxu0 0.0
    %1244 = vmatpush.msra.mxu0 0.0
    %1245 = vmatpush.msra.mxu0 0.0
    %1246 = vmatpush.msra.mxu0 0.0
    %1247 = vmatpush.msra.mxu0 0.0
    %1248 = vmatpush.msra.mxu0 0.0
    %1249 = vmatpush.msra.mxu0 0.0
    %1250 = vmatpush.msra.mxu0 0.0
    %1251 = vmatpush.msra.mxu0 %v66
    %1252 = vmatpush.msra.mxu0 %v65
    %1253 = vmatpush.msra.mxu0 %v64
    %1254 = vmatpush.msra.mxu0 %v63
    %1255 = vmatmul.f32.gmra.mxu0 %v1237
    %v1256 = vpop.f32.mrf.mxu0
    %v1257 = vadd.f32 %v70, %v1256
    %1258 = vdwg.mxu0
    %1259 = vst [vmem:[#allocation5] sm:$0x1] %v1257
    // Predicated region
    $region18: #{tpu_custom_call.1} parent=1 // pred_check
      _
    $region19: #{tpu_custom_call.1} parent=1 // pred_check_branch
      %1261 = sbr.rel (0) target = $region21
    $region20: #{tpu_custom_call.1} parent=1 // pred_region
      %1263 = vsyncadd [#allocation4], 0
      %s1265 = sshll.u32 [#allocation5], 4
      %s1266 = int_to_ptr.vmem [resolvable:$true] %s1265
      %s1267 = sshll.u32 %s3, 4
      %s1268 = int_to_ptr.hbm [resolvable:$true] %s1267
      %1270 = dma.vmem_to_hbm [thread:$0]  %s1266, 16, %s1268, [#allocation4]
    $region21: #{tpu_custom_call.1} parent=1 // pred_fallthru
      _
    // Predicated region
    $region22: #{tpu_custom_call.1} parent=1 // pred_check
      _
    $region23: #{tpu_custom_call.1} parent=1 // pred_check_branch
      %1272 = sbr.rel (0) target = $region25
    $region24: #{tpu_custom_call.1} parent=1 // pred_region
      %1274 = dma.done [#allocation4], 16
    $region25: #{tpu_custom_call.1} parent=1 // pred_fallthru
      _
    %1275 = vsyncpa [#allocation3], 1
    %1276 = vsyncpa [#allocation4], 1

</llo_original>
